<compile_context>
chip_gen: v5e
topology: v5e:2x2
jax: 0.10.0
libtpu: 0.0.40
codegen_flags: <defaults>
</compile_context>

<pallas_src>
import functools
import jax
import jax.numpy as jnp
from jax import lax
from jax.experimental import pallas as pl
from jax.experimental.pallas import tpu as pltpu

EPS = 1e-6
NEG_INF = -1e30  # finite large-negative mask value (safe for softmax)


# ----------------------------- in-kernel helpers -----------------------------

def _layernorm(x, gamma, beta):
    # Matches the torch module exactly: unbiased std, eps added OUTSIDE sqrt.
    n = x.shape[-1]
    mean = jnp.mean(x, axis=-1, keepdims=True)
    var = jnp.sum((x - mean) ** 2, axis=-1, keepdims=True) / (n - 1)
    std = jnp.sqrt(var)
    return gamma * ((x - mean) / (std + EPS)) + beta


def _softmax(x):
    m = jnp.max(x, axis=-1, keepdims=True)
    e = jnp.exp(x - m)
    return e * pl.reciprocal(jnp.sum(e, axis=-1, keepdims=True), approx=True)


# ------------------------------ fused LM kernel -------------------------------

def fused_lm_kernel(x0_ref, bias_ref,
                    wq_ref, wk_ref, wv_ref, wp_ref, bp_ref,
                    g1_ref, b1_ref, g2_ref, b2_ref,
                    w1_ref, bf1_ref, w2_ref, bf2_ref,
                    gf_ref, bef_ref, wh_ref, bh_ref,
                    o_ref, h_ref, *, n_heads, head_size):
    layer = pl.program_id(0)

    # Load the embedded tokens into the resident activation scratch once.
    @pl.when(layer == 0)
    def _():
        h_ref[...] = x0_ref[...]

    x = h_ref[...]                           # (M, E) f32, resident across layers
    bias = bias_ref[...]                     # (M, M) additive causal/same-seq mask
    scale = 1.0 / (head_size ** 0.5)

    # ---------------- attention (residual adds the *normed* x, as in torch) ---
    xn = _layernorm(x, g1_ref[0], b1_ref[0])
    xn_b = xn.astype(jnp.bfloat16)
    q = jnp.dot(xn_b, wq_ref[0], preferred_element_type=jnp.float32)  # (M, nH*H)
    k = jnp.dot(xn_b, wk_ref[0], preferred_element_type=jnp.float32)
    v = jnp.dot(xn_b, wv_ref[0], preferred_element_type=jnp.float32)

    head_outs = []
    for h in range(n_heads):                 # static, small; mask hoisted outside
        sl = slice(h * head_size, (h + 1) * head_size)
        s = jnp.dot(q[:, sl].astype(jnp.bfloat16),
                    k[:, sl].T.astype(jnp.bfloat16),
                    preferred_element_type=jnp.float32) * scale + bias
        p = _softmax(s)
        head_outs.append(jnp.dot(p.astype(jnp.bfloat16),
                                 v[:, sl].astype(jnp.bfloat16),
                                 preferred_element_type=jnp.float32))
    heads = jnp.concatenate(head_outs, axis=-1)                       # (M, nH*H)
    attn = jnp.dot(heads.astype(jnp.bfloat16), wp_ref[0],
                   preferred_element_type=jnp.float32) + bp_ref[0]
    x1 = attn + xn

    # ---------------- feed forward --------------------------------------------
    xn2 = _layernorm(x1, g2_ref[0], b2_ref[0])
    hid = jnp.dot(xn2.astype(jnp.bfloat16), w1_ref[0],
                  preferred_element_type=jnp.float32) + bf1_ref[0]
    hid = jnp.maximum(hid, 0.0)
    ff = jnp.dot(hid.astype(jnp.bfloat16), w2_ref[0],
                 preferred_element_type=jnp.float32) + bf2_ref[0]
    x_out = ff + xn2

    h_ref[...] = x_out

    # ---------------- final norm + lm head on the last layer step -------------
    @pl.when(layer == pl.num_programs(0) - 1)
    def _():
        xnf = _layernorm(x_out, gf_ref[...], bef_ref[...])
        o_ref[...] = jnp.dot(xnf.astype(jnp.bfloat16), wh_ref[...],
                             preferred_element_type=jnp.float32) + bh_ref[...]


# --------------------------------- full model ---------------------------------

def transformer_lm_forward(tokens, params, *, n_heads, head_size):
    B, T = tokens.shape
    E = params["tok_emb"].shape[1]
    V = params["w_head"].shape[1]
    L = len(params["layers"])
    FF = params["layers"][0]["w1"].shape[1]
    M = B * T
    NHH = n_heads * head_size
    Vp = ((V + 127) // 128) * 128            # lane-dense lm-head output

    # ---- embedding gather (plain-JAX glue), flatten batch into rows ----------
    x0 = (params["tok_emb"][tokens] + params["pos_emb"][:T][None]) \
        .reshape(M, E).astype(jnp.float32)

    # ---- precomputed additive attention bias: causal & same-sequence ---------
    idx = jnp.arange(M)
    b_idx, t_idx = idx // T, idx % T
    keep = (b_idx[:, None] == b_idx[None, :]) & (t_idx[None, :] <= t_idx[:, None])
    attn_bias = jnp.where(keep, 0.0, NEG_INF).astype(jnp.float32)     # (M, M)

    # ---- stack per-layer weights (leading layer axis); fuse heads; bf16 ------
    def stack(name):
        return jnp.stack([lp[name] for lp in params["layers"]])

    def fuse_qkv(name):
        w = stack(name)                                               # (L,nH,E,H)
        return jnp.transpose(w, (0, 2, 1, 3)).reshape(L, E, NHH)

    WQ = fuse_qkv("wq").astype(jnp.bfloat16)
    WK = fuse_qkv("wk").astype(jnp.bfloat16)
    WV = fuse_qkv("wv").astype(jnp.bfloat16)
    WP = stack("wproj").astype(jnp.bfloat16)                          # (L,NHH,E)
    BP = stack("bproj")
    G1, B1 = stack("g1"), stack("be1")
    G2, B2 = stack("g2"), stack("be2")
    W1 = stack("w1").astype(jnp.bfloat16)                             # (L,E,FF)
    BF1 = stack("bf1")
    W2 = stack("w2").astype(jnp.bfloat16)                             # (L,FF,E)
    BF2 = stack("bf2")

    GF, BEF = params["gf"], params["bef"]
    WH = jnp.zeros((E, Vp), jnp.bfloat16).at[:, :V].set(
        params["w_head"].astype(jnp.bfloat16))
    BH = jnp.zeros((1, Vp), jnp.float32).at[:, :V].set(params["b_head"])

    # ---- BlockSpecs -----------------------------------------------------------
    def per_layer(arr):
        nd = arr.ndim
        return pl.BlockSpec((1,) + arr.shape[1:],
                            lambda l, _nd=nd: (l,) + (0,) * (_nd - 1))

    def shared(arr):
        nd = arr.ndim
        return pl.BlockSpec(arr.shape, lambda l, _nd=nd: (0,) * _nd)

    layer_args = (WQ, WK, WV, WP, BP, G1, B1, G2, B2, W1, BF1, W2, BF2)
    shared_args = (GF, BEF, WH, BH)

    # ---- advisory cost estimate ----------------------------------------------
    flops = L * (3 * 2 * M * E * NHH            # fused q/k/v projections
                 + n_heads * 4 * M * M * head_size   # scores + p@v
                 + 2 * M * NHH * E              # output projection
                 + 4 * M * E * FF)              # feed-forward
    flops += 2 * M * E * Vp                     # lm head
    transcendentals = L * n_heads * M * M       # softmax exps
    bytes_accessed = (x0.size * 4 + attn_bias.size * 4 + M * Vp * 4
                      + sum(int(a.size) * a.dtype.itemsize
                            for a in layer_args + shared_args))

    kernel = functools.partial(fused_lm_kernel, n_heads=n_heads,
                               head_size=head_size)

    logits_p = pl.pallas_call(
        kernel,
        out_shape=jax.ShapeDtypeStruct((M, Vp), jnp.float32),
        grid=(L,),
        in_specs=[pl.BlockSpec((M, E), lambda l: (0, 0)),
                  pl.BlockSpec((M, M), lambda l: (0, 0))]
                 + [per_layer(a) for a in layer_args]
                 + [shared(a) for a in shared_args],
        out_specs=pl.BlockSpec((M, Vp), lambda l: (0, 0)),
        scratch_shapes=[pltpu.VMEM((M, E), jnp.float32)],
        compiler_params=pltpu.CompilerParams(
            dimension_semantics=("arbitrary",),       # layers are sequential
            vmem_limit_bytes=32 * 1024 * 1024),
        cost_estimate=pl.CostEstimate(flops=int(flops),
                                      transcendentals=int(transcendentals),
                                      bytes_accessed=int(bytes_accessed)),
    )(x0, attn_bias, *layer_args, *shared_args)

    return logits_p[:, :V].reshape(B, T, V)


# --------------------------- pure-JAX reference (check) ------------------------

def _ref_layernorm(x, g, b):
    mean = x.mean(-1, keepdims=True)
    var = ((x - mean) ** 2).sum(-1, keepdims=True) / (x.shape[-1] - 1)
    return g * ((x - mean) / (jnp.sqrt(var) + EPS)) + b


def ref_forward(tokens, params, n_heads, head_size):
    B, T = tokens.shape
    x = params["tok_emb"][tokens] + params["pos_emb"][:T][None]
    mask = jnp.triu(jnp.ones((T, T), bool), k=1)
    for p in params["layers"]:
        xn = _ref_layernorm(x, p["g1"], p["be1"])
        heads = []
        for h in range(n_heads):
            q = xn @ p["wq"][h]
            k = xn @ p["wk"][h]
            v = xn @ p["wv"][h]
            s = jnp.einsum("btd,bsd->bts", q, k) / head_size ** 0.5
            s = jnp.where(mask, -jnp.inf, s)
            w = jax.nn.softmax(s, axis=-1)
            heads.append(jnp.einsum("bts,bsd->btd", w, v))
        attn = jnp.concatenate(heads, -1) @ p["wproj"] + p["bproj"]
        x1 = attn + xn
        xn2 = _ref_layernorm(x1, p["g2"], p["be2"])
        ff = jax.nn.relu(xn2 @ p["w1"] + p["bf1"]) @ p["w2"] + p["bf2"]
        x = ff + xn2
    xn = _ref_layernorm(x, params["gf"], params["bef"])
    return xn @ params["w_head"] + params["b_head"]


# ------------------------------------ main ------------------------------------

def init_params(key, *, vocab_size, embed_size, max_ctx, n_layer, n_heads,
                head_size, ff_hidden):
    def nrm(k, shape, scale=0.05):
        return scale * jax.random.normal(k, shape, jnp.float32)

    keys = jax.random.split(key, 4 + n_layer)
    params = {
        "tok_emb": nrm(keys[0], (vocab_size, embed_size)),
        "pos_emb": nrm(keys[1], (max_ctx, embed_size)),
        "gf": jnp.ones((1, embed_size), jnp.float32),
        "bef": jnp.zeros((1, embed_size), jnp.float32),
        "w_head": nrm(keys[2], (embed_size, vocab_size)),
        "b_head": nrm(keys[3], (1, vocab_size)),
        "layers": [],
    }
    for li in range(n_layer):
        ks = jax.random.split(keys[4 + li], 8)
        params["layers"].append({
            "wq": nrm(ks[0], (n_heads, embed_size, head_size)),
            "wk": nrm(ks[1], (n_heads, embed_size, head_size)),
            "wv": nrm(ks[2], (n_heads, embed_size, head_size)),
            "wproj": nrm(ks[3], (n_heads * head_size, embed_size)),
            "bproj": nrm(ks[4], (1, embed_size)),
            "g1": jnp.ones((1, embed_size), jnp.float32),
            "be1": jnp.zeros((1, embed_size), jnp.float32),
            "g2": jnp.ones((1, embed_size), jnp.float32),
            "be2": jnp.zeros((1, embed_size), jnp.float32),
            "w1": nrm(ks[5], (embed_size, ff_hidden)),
            "bf1": nrm(ks[6], (1, ff_hidden)),
            "w2": nrm(ks[7], (ff_hidden, embed_size)),
            "bf2": jnp.zeros((1, embed_size), jnp.float32),
        })
    return params


if __name__ == "__main__":
    # Small config: vocab=64, embed=32, max_context=16, layers=2, heads=4, ff=128
    VOCAB, EMBED, MAX_CTX, N_LAYER, N_HEADS = 64, 32, 16, 2, 4
    HEAD = EMBED // N_HEADS          # head_size=None -> embed_size // n_heads
    FF = 4 * EMBED                   # ff_hidden_size=None -> 4 * embed_size
    B, T = 2, 8

    key = jax.random.PRNGKey(0)
    pkey, tkey = jax.random.split(key)
    params = init_params(pkey, vocab_size=VOCAB, embed_size=EMBED, max_ctx=MAX_CTX,
                         n_layer=N_LAYER, n_heads=N_HEADS, head_size=HEAD,
                         ff_hidden=FF)
    tokens = jax.random.randint(tkey, (B, T), 0, VOCAB, dtype=jnp.int32)

    logits = transformer_lm_forward(tokens, params, n_heads=N_HEADS, head_size=HEAD)
    logits = jax.block_until_ready(logits)

    ref = ref_forward(tokens, params, N_HEADS, HEAD)
    assert logits.shape == (B, T, VOCAB)
    assert bool(jnp.all(jnp.isfinite(logits)))
    # bf16 matmul operands (f32 accumulate) -> slightly looser tolerance than pure f32.
    assert bool(jnp.allclose(logits, ref, atol=4e-2, rtol=4e-2)), \
        float(jnp.max(jnp.abs(logits - ref)))

    print("KERNEL_OK")
</pallas_src>

<mosaic_0001>
module attributes {stable_mosaic.version = 11 : i64} {
  func.func @fused_lm_kernel(%arg0: i32, %arg1: memref<16x32xf32, #tpu.memory_space<vmem>>, %arg2: memref<16x16xf32, #tpu.memory_space<vmem>>, %arg3: memref<1x32x32xbf16, #tpu.memory_space<vmem>>, %arg4: memref<1x32x32xbf16, #tpu.memory_space<vmem>>, %arg5: memref<1x32x32xbf16, #tpu.memory_space<vmem>>, %arg6: memref<1x32x32xbf16, #tpu.memory_space<vmem>>, %arg7: memref<1x1x32xf32, #tpu.memory_space<vmem>>, %arg8: memref<1x1x32xf32, #tpu.memory_space<vmem>>, %arg9: memref<1x1x32xf32, #tpu.memory_space<vmem>>, %arg10: memref<1x1x32xf32, #tpu.memory_space<vmem>>, %arg11: memref<1x1x32xf32, #tpu.memory_space<vmem>>, %arg12: memref<1x32x128xbf16, #tpu.memory_space<vmem>>, %arg13: memref<1x1x128xf32, #tpu.memory_space<vmem>>, %arg14: memref<1x128x32xbf16, #tpu.memory_space<vmem>>, %arg15: memref<1x1x32xf32, #tpu.memory_space<vmem>>, %arg16: memref<1x32xf32, #tpu.memory_space<vmem>>, %arg17: memref<1x32xf32, #tpu.memory_space<vmem>>, %arg18: memref<32x128xbf16, #tpu.memory_space<vmem>>, %arg19: memref<1x128xf32, #tpu.memory_space<vmem>>, %arg20: memref<16x128xf32, #tpu.memory_space<vmem>>, %arg21: memref<16x32xf32, #tpu.memory_space<vmem>>) attributes {dimension_semantics = [#tpu.dimension_semantics<arbitrary>], iteration_bounds = array<i64: 2>, scalar_prefetch = 0 : i64, scratch_operands = 1 : i64, tpu.core_type = #tpu.core_type<tc>, window_params = [{pipeline_mode = #tpu.pipeline_mode<synchronous>, transform_indices = @transform_0, window_bounds = array<i64: 16, 32>}, {pipeline_mode = #tpu.pipeline_mode<synchronous>, transform_indices = @transform_1, window_bounds = array<i64: 16, 16>}, {transform_indices = @transform_2, window_bounds = array<i64: 1, 32, 32>}, {transform_indices = @transform_3, window_bounds = array<i64: 1, 32, 32>}, {transform_indices = @transform_4, window_bounds = array<i64: 1, 32, 32>}, {transform_indices = @transform_5, window_bounds = array<i64: 1, 32, 32>}, {transform_indices = @transform_6, window_bounds = array<i64: 1, 1, 32>}, {transform_indices = @transform_7, window_bounds = array<i64: 1, 1, 32>}, {transform_indices = @transform_8, window_bounds = array<i64: 1, 1, 32>}, {transform_indices = @transform_9, window_bounds = array<i64: 1, 1, 32>}, {transform_indices = @transform_10, window_bounds = array<i64: 1, 1, 32>}, {transform_indices = @transform_11, window_bounds = array<i64: 1, 32, 128>}, {transform_indices = @transform_12, window_bounds = array<i64: 1, 1, 128>}, {transform_indices = @transform_13, window_bounds = array<i64: 1, 128, 32>}, {transform_indices = @transform_14, window_bounds = array<i64: 1, 1, 32>}, {pipeline_mode = #tpu.pipeline_mode<synchronous>, transform_indices = @transform_15, window_bounds = array<i64: 1, 32>}, {pipeline_mode = #tpu.pipeline_mode<synchronous>, transform_indices = @transform_16, window_bounds = array<i64: 1, 32>}, {pipeline_mode = #tpu.pipeline_mode<synchronous>, transform_indices = @transform_17, window_bounds = array<i64: 32, 128>}, {pipeline_mode = #tpu.pipeline_mode<synchronous>, transform_indices = @transform_18, window_bounds = array<i64: 1, 128>}, {pipeline_mode = #tpu.pipeline_mode<synchronous>, transform_indices = @transform_19, window_bounds = array<i64: 16, 128>}]} {
    %c0_i32 = arith.constant 0 : i32
    %0 = arith.cmpi eq, %arg0, %c0_i32 : i32
    %1 = arith.extui %0 : i1 to i32
    %c0_i32_0 = arith.constant 0 : i32
    %2 = arith.cmpi ne, %1, %c0_i32_0 : i32
    scf.if %2 {
      %c0_82 = arith.constant 0 : index
      %c0_83 = arith.constant 0 : index
      %192 = vector.load %arg1[%c0_82, %c0_83] : memref<16x32xf32, #tpu.memory_space<vmem>>, vector<16x32xf32>
      %c0_84 = arith.constant 0 : index
      %c0_85 = arith.constant 0 : index
      %193 = vector.load %arg21[%c0_84, %c0_85] : memref<16x32xf32, #tpu.memory_space<vmem>>, vector<16x32xf32>
      tpu.vector_store %arg21[%c0_84, %c0_85], %192 {strides = array<i32>} : memref<16x32xf32, #tpu.memory_space<vmem>>, vector<16x32xf32>,
    } else {
    }
    %c0 = arith.constant 0 : index
    %c0_1 = arith.constant 0 : index
    %3 = vector.load %arg21[%c0, %c0_1] : memref<16x32xf32, #tpu.memory_space<vmem>>, vector<16x32xf32>
    %c0_2 = arith.constant 0 : index
    %c0_3 = arith.constant 0 : index
    %4 = vector.load %arg2[%c0_2, %c0_3] : memref<16x16xf32, #tpu.memory_space<vmem>>, vector<16x16xf32>
    %c0_4 = arith.constant 0 : index
    %c0_5 = arith.constant 0 : index
    %c0_6 = arith.constant 0 : index
    %5 = vector.load %arg8[%c0_4, %c0_5, %c0_6] : memref<1x1x32xf32, #tpu.memory_space<vmem>>, vector<1x1x32xf32>
    %6 = vector.shape_cast %5 : vector<1x1x32xf32> to vector<1x32xf32>
    %c0_7 = arith.constant 0 : index
    %c0_8 = arith.constant 0 : index
    %c0_9 = arith.constant 0 : index
    %7 = vector.load %arg9[%c0_7, %c0_8, %c0_9] : memref<1x1x32xf32, #tpu.memory_space<vmem>>, vector<1x1x32xf32>
    %8 = vector.shape_cast %7 : vector<1x1x32xf32> to vector<1x32xf32>
    %cst = arith.constant dense<0.000000e+00> : vector<16xf32>
    %9 = vector.multi_reduction <add>, %3, %cst [1] : vector<16x32xf32> to vector<16xf32>
    %10 = vector.shape_cast %9 : vector<16xf32> to vector<16x1xf32>
    %cst_10 = arith.constant 3.200000e+01 : f32
    %11 = vector.broadcast %cst_10 : f32 to vector<16x1xf32>
    %12 = arith.divf %10, %11 : vector<16x1xf32>
    %13 = vector.broadcast %12 : vector<16x1xf32> to vector<16x32xf32>
    %14 = arith.subf %3, %13 : vector<16x32xf32>
    %15 = arith.mulf %14, %14 : vector<16x32xf32>
    %cst_11 = arith.constant dense<0.000000e+00> : vector<16xf32>
    %16 = vector.multi_reduction <add>, %15, %cst_11 [1] : vector<16x32xf32> to vector<16xf32>
    %17 = vector.shape_cast %16 : vector<16xf32> to vector<16x1xf32>
    %cst_12 = arith.constant 3.100000e+01 : f32
    %18 = vector.broadcast %cst_12 : f32 to vector<16x1xf32>
    %19 = arith.divf %17, %18 : vector<16x1xf32>
    %20 = math.sqrt %19 : vector<16x1xf32>
    %21 = vector.broadcast %12 : vector<16x1xf32> to vector<16x32xf32>
    %22 = arith.subf %3, %21 : vector<16x32xf32>
    %cst_13 = arith.constant 9.99999997E-7 : f32
    %23 = vector.broadcast %cst_13 : f32 to vector<16x1xf32>
    %24 = arith.addf %20, %23 : vector<16x1xf32>
    %25 = vector.broadcast %24 : vector<16x1xf32> to vector<16x32xf32>
    %26 = arith.divf %22, %25 : vector<16x32xf32>
    %27 = vector.broadcast %6 : vector<1x32xf32> to vector<16x32xf32>
    %28 = arith.mulf %27, %26 : vector<16x32xf32>
    %29 = vector.broadcast %8 : vector<1x32xf32> to vector<16x32xf32>
    %30 = arith.addf %28, %29 : vector<16x32xf32>
    %31 = arith.truncf %30 : vector<16x32xf32> to vector<16x32xbf16>
    %c0_14 = arith.constant 0 : index
    %c0_15 = arith.constant 0 : index
    %c0_16 = arith.constant 0 : index
    %32 = vector.load %arg3[%c0_14, %c0_15, %c0_16] : memref<1x32x32xbf16, #tpu.memory_space<vmem>>, vector<1x32x32xbf16>
    %33 = vector.shape_cast %32 : vector<1x32x32xbf16> to vector<32x32xbf16>
    %cst_17 = arith.constant dense<0.000000e+00> : vector<16x32xf32>
    %34 = tpu.matmul %31, %33, %cst_17 {dimension_numbers = #tpu.dot_dimension_numbers<[1], [0], [0], [1], [0, 0, 1, 1], [], []>} : vector<16x32xbf16>, vector<32x32xbf16>, vector<16x32xf32> -> vector<16x32xf32>
    %c0_18 = arith.constant 0 : index
    %c0_19 = arith.constant 0 : index
    %c0_20 = arith.constant 0 : index
    %35 = vector.load %arg4[%c0_18, %c0_19, %c0_20] : memref<1x32x32xbf16, #tpu.memory_space<vmem>>, vector<1x32x32xbf16>
    %36 = vector.shape_cast %35 : vector<1x32x32xbf16> to vector<32x32xbf16>
    %cst_21 = arith.constant dense<0.000000e+00> : vector<16x32xf32>
    %37 = tpu.matmul %31, %36, %cst_21 {dimension_numbers = #tpu.dot_dimension_numbers<[1], [0], [0], [1], [0, 0, 1, 1], [], []>} : vector<16x32xbf16>, vector<32x32xbf16>, vector<16x32xf32> -> vector<16x32xf32>
    %c0_22 = arith.constant 0 : index
    %c0_23 = arith.constant 0 : index
    %c0_24 = arith.constant 0 : index
    %38 = vector.load %arg5[%c0_22, %c0_23, %c0_24] : memref<1x32x32xbf16, #tpu.memory_space<vmem>>, vector<1x32x32xbf16>
    %39 = vector.shape_cast %38 : vector<1x32x32xbf16> to vector<32x32xbf16>
    %cst_25 = arith.constant dense<0.000000e+00> : vector<16x32xf32>
    %40 = tpu.matmul %31, %39, %cst_25 {dimension_numbers = #tpu.dot_dimension_numbers<[1], [0], [0], [1], [0, 0, 1, 1], [], []>} : vector<16x32xbf16>, vector<32x32xbf16>, vector<16x32xf32> -> vector<16x32xf32>
    %41 = vector.extract_strided_slice %34 {offsets = [0, 0], sizes = [16, 8], strides = [1, 1]} : vector<16x32xf32> to vector<16x8xf32>
    %42 = arith.truncf %41 : vector<16x8xf32> to vector<16x8xbf16>
    %43 = vector.extract_strided_slice %37 {offsets = [0, 0], sizes = [16, 8], strides = [1, 1]} : vector<16x32xf32> to vector<16x8xf32>
    %44 = tpu.transpose %43, [1, 0] : vector<16x8xf32> -> vector<8x16xf32>
    %45 = arith.truncf %44 : vector<8x16xf32> to vector<8x16xbf16>
    %cst_26 = arith.constant dense<0.000000e+00> : vector<16x16xf32>
    %46 = tpu.matmul %42, %45, %cst_26 {dimension_numbers = #tpu.dot_dimension_numbers<[1], [0], [0], [1], [0, 0, 1, 1], [], []>} : vector<16x8xbf16>, vector<8x16xbf16>, vector<16x16xf32> -> vector<16x16xf32>
    %cst_27 = arith.constant 0.353553385 : f32
    %47 = vector.broadcast %cst_27 : f32 to vector<16x16xf32>
    %48 = arith.mulf %46, %47 : vector<16x16xf32>
    %49 = arith.addf %48, %4 : vector<16x16xf32>
    %cst_28 = arith.constant dense<0xFF800000> : vector<16xf32>
    %50 = vector.multi_reduction <maximumf>, %49, %cst_28 [1] : vector<16x16xf32> to vector<16xf32>
    %51 = vector.shape_cast %50 : vector<16xf32> to vector<16x1xf32>
    %52 = vector.broadcast %51 : vector<16x1xf32> to vector<16x16xf32>
    %53 = arith.subf %49, %52 : vector<16x16xf32>
    %54 = math.exp %53 : vector<16x16xf32>
    %cst_29 = arith.constant dense<0.000000e+00> : vector<16xf32>
    %55 = vector.multi_reduction <add>, %54, %cst_29 [1] : vector<16x16xf32> to vector<16xf32>
    %56 = vector.shape_cast %55 : vector<16xf32> to vector<16x1xf32>
    %57 = tpu.reciprocal %56 {approx = true} : vector<16x1xf32> -> vector<16x1xf32>
    %58 = vector.broadcast %57 : vector<16x1xf32> to vector<16x16xf32>
    %59 = arith.mulf %54, %58 : vector<16x16xf32>
    %60 = arith.truncf %59 : vector<16x16xf32> to vector<16x16xbf16>
    %61 = vector.extract_strided_slice %40 {offsets = [0, 0], sizes = [16, 8], strides = [1, 1]} : vector<16x32xf32> to vector<16x8xf32>
    %62 = arith.truncf %61 : vector<16x8xf32> to vector<16x8xbf16>
    %cst_30 = arith.constant dense<0.000000e+00> : vector<16x8xf32>
    %63 = tpu.matmul %60, %62, %cst_30 {dimension_numbers = #tpu.dot_dimension_numbers<[1], [0], [0], [1], [0, 0, 1, 1], [], []>} : vector<16x16xbf16>, vector<16x8xbf16>, vector<16x8xf32> -> vector<16x8xf32>
    %64 = vector.extract_strided_slice %34 {offsets = [0, 8], sizes = [16, 8], strides = [1, 1]} : vector<16x32xf32> to vector<16x8xf32>
    %65 = arith.truncf %64 : vector<16x8xf32> to vector<16x8xbf16>
    %66 = vector.extract_strided_slice %37 {offsets = [0, 8], sizes = [16, 8], strides = [1, 1]} : vector<16x32xf32> to vector<16x8xf32>
    %67 = tpu.transpose %66, [1, 0] : vector<16x8xf32> -> vector<8x16xf32>
    %68 = arith.truncf %67 : vector<8x16xf32> to vector<8x16xbf16>
    %cst_31 = arith.constant dense<0.000000e+00> : vector<16x16xf32>
    %69 = tpu.matmul %65, %68, %cst_31 {dimension_numbers = #tpu.dot_dimension_numbers<[1], [0], [0], [1], [0, 0, 1, 1], [], []>} : vector<16x8xbf16>, vector<8x16xbf16>, vector<16x16xf32> -> vector<16x16xf32>
    %cst_32 = arith.constant 0.353553385 : f32
    %70 = vector.broadcast %cst_32 : f32 to vector<16x16xf32>
    %71 = arith.mulf %69, %70 : vector<16x16xf32>
    %72 = arith.addf %71, %4 : vector<16x16xf32>
    %cst_33 = arith.constant dense<0xFF800000> : vector<16xf32>
    %73 = vector.multi_reduction <maximumf>, %72, %cst_33 [1] : vector<16x16xf32> to vector<16xf32>
    %74 = vector.shape_cast %73 : vector<16xf32> to vector<16x1xf32>
    %75 = vector.broadcast %74 : vector<16x1xf32> to vector<16x16xf32>
    %76 = arith.subf %72, %75 : vector<16x16xf32>
    %77 = math.exp %76 : vector<16x16xf32>
    %cst_34 = arith.constant dense<0.000000e+00> : vector<16xf32>
    %78 = vector.multi_reduction <add>, %77, %cst_34 [1] : vector<16x16xf32> to vector<16xf32>
    %79 = vector.shape_cast %78 : vector<16xf32> to vector<16x1xf32>
    %80 = tpu.reciprocal %79 {approx = true} : vector<16x1xf32> -> vector<16x1xf32>
    %81 = vector.broadcast %80 : vector<16x1xf32> to vector<16x16xf32>
    %82 = arith.mulf %77, %81 : vector<16x16xf32>
    %83 = arith.truncf %82 : vector<16x16xf32> to vector<16x16xbf16>
    %84 = vector.extract_strided_slice %40 {offsets = [0, 8], sizes = [16, 8], strides = [1, 1]} : vector<16x32xf32> to vector<16x8xf32>
    %85 = arith.truncf %84 : vector<16x8xf32> to vector<16x8xbf16>
    %cst_35 = arith.constant dense<0.000000e+00> : vector<16x8xf32>
    %86 = tpu.matmul %83, %85, %cst_35 {dimension_numbers = #tpu.dot_dimension_numbers<[1], [0], [0], [1], [0, 0, 1, 1], [], []>} : vector<16x16xbf16>, vector<16x8xbf16>, vector<16x8xf32> -> vector<16x8xf32>
    %87 = vector.extract_strided_slice %34 {offsets = [0, 16], sizes = [16, 8], strides = [1, 1]} : vector<16x32xf32> to vector<16x8xf32>
    %88 = arith.truncf %87 : vector<16x8xf32> to vector<16x8xbf16>
    %89 = vector.extract_strided_slice %37 {offsets = [0, 16], sizes = [16, 8], strides = [1, 1]} : vector<16x32xf32> to vector<16x8xf32>
    %90 = tpu.transpose %89, [1, 0] : vector<16x8xf32> -> vector<8x16xf32>
    %91 = arith.truncf %90 : vector<8x16xf32> to vector<8x16xbf16>
    %cst_36 = arith.constant dense<0.000000e+00> : vector<16x16xf32>
    %92 = tpu.matmul %88, %91, %cst_36 {dimension_numbers = #tpu.dot_dimension_numbers<[1], [0], [0], [1], [0, 0, 1, 1], [], []>} : vector<16x8xbf16>, vector<8x16xbf16>, vector<16x16xf32> -> vector<16x16xf32>
    %cst_37 = arith.constant 0.353553385 : f32
    %93 = vector.broadcast %cst_37 : f32 to vector<16x16xf32>
    %94 = arith.mulf %92, %93 : vector<16x16xf32>
    %95 = arith.addf %94, %4 : vector<16x16xf32>
    %cst_38 = arith.constant dense<0xFF800000> : vector<16xf32>
    %96 = vector.multi_reduction <maximumf>, %95, %cst_38 [1] : vector<16x16xf32> to vector<16xf32>
    %97 = vector.shape_cast %96 : vector<16xf32> to vector<16x1xf32>
    %98 = vector.broadcast %97 : vector<16x1xf32> to vector<16x16xf32>
    %99 = arith.subf %95, %98 : vector<16x16xf32>
    %100 = math.exp %99 : vector<16x16xf32>
    %cst_39 = arith.constant dense<0.000000e+00> : vector<16xf32>
    %101 = vector.multi_reduction <add>, %100, %cst_39 [1] : vector<16x16xf32> to vector<16xf32>
    %102 = vector.shape_cast %101 : vector<16xf32> to vector<16x1xf32>
    %103 = tpu.reciprocal %102 {approx = true} : vector<16x1xf32> -> vector<16x1xf32>
    %104 = vector.broadcast %103 : vector<16x1xf32> to vector<16x16xf32>
    %105 = arith.mulf %100, %104 : vector<16x16xf32>
    %106 = arith.truncf %105 : vector<16x16xf32> to vector<16x16xbf16>
    %107 = vector.extract_strided_slice %40 {offsets = [0, 16], sizes = [16, 8], strides = [1, 1]} : vector<16x32xf32> to vector<16x8xf32>
    %108 = arith.truncf %107 : vector<16x8xf32> to vector<16x8xbf16>
    %cst_40 = arith.constant dense<0.000000e+00> : vector<16x8xf32>
    %109 = tpu.matmul %106, %108, %cst_40 {dimension_numbers = #tpu.dot_dimension_numbers<[1], [0], [0], [1], [0, 0, 1, 1], [], []>} : vector<16x16xbf16>, vector<16x8xbf16>, vector<16x8xf32> -> vector<16x8xf32>
    %110 = vector.extract_strided_slice %34 {offsets = [0, 24], sizes = [16, 8], strides = [1, 1]} : vector<16x32xf32> to vector<16x8xf32>
    %111 = arith.truncf %110 : vector<16x8xf32> to vector<16x8xbf16>
    %112 = vector.extract_strided_slice %37 {offsets = [0, 24], sizes = [16, 8], strides = [1, 1]} : vector<16x32xf32> to vector<16x8xf32>
    %113 = tpu.transpose %112, [1, 0] : vector<16x8xf32> -> vector<8x16xf32>
    %114 = arith.truncf %113 : vector<8x16xf32> to vector<8x16xbf16>
    %cst_41 = arith.constant dense<0.000000e+00> : vector<16x16xf32>
    %115 = tpu.matmul %111, %114, %cst_41 {dimension_numbers = #tpu.dot_dimension_numbers<[1], [0], [0], [1], [0, 0, 1, 1], [], []>} : vector<16x8xbf16>, vector<8x16xbf16>, vector<16x16xf32> -> vector<16x16xf32>
    %cst_42 = arith.constant 0.353553385 : f32
    %116 = vector.broadcast %cst_42 : f32 to vector<16x16xf32>
    %117 = arith.mulf %115, %116 : vector<16x16xf32>
    %118 = arith.addf %117, %4 : vector<16x16xf32>
    %cst_43 = arith.constant dense<0xFF800000> : vector<16xf32>
    %119 = vector.multi_reduction <maximumf>, %118, %cst_43 [1] : vector<16x16xf32> to vector<16xf32>
    %120 = vector.shape_cast %119 : vector<16xf32> to vector<16x1xf32>
    %121 = vector.broadcast %120 : vector<16x1xf32> to vector<16x16xf32>
    %122 = arith.subf %118, %121 : vector<16x16xf32>
    %123 = math.exp %122 : vector<16x16xf32>
    %cst_44 = arith.constant dense<0.000000e+00> : vector<16xf32>
    %124 = vector.multi_reduction <add>, %123, %cst_44 [1] : vector<16x16xf32> to vector<16xf32>
    %125 = vector.shape_cast %124 : vector<16xf32> to vector<16x1xf32>
    %126 = tpu.reciprocal %125 {approx = true} : vector<16x1xf32> -> vector<16x1xf32>
    %127 = vector.broadcast %126 : vector<16x1xf32> to vector<16x16xf32>
    %128 = arith.mulf %123, %127 : vector<16x16xf32>
    %129 = arith.truncf %128 : vector<16x16xf32> to vector<16x16xbf16>
    %130 = vector.extract_strided_slice %40 {offsets = [0, 24], sizes = [16, 8], strides = [1, 1]} : vector<16x32xf32> to vector<16x8xf32>
    %131 = arith.truncf %130 : vector<16x8xf32> to vector<16x8xbf16>
    %cst_45 = arith.constant dense<0.000000e+00> : vector<16x8xf32>
    %132 = tpu.matmul %129, %131, %cst_45 {dimension_numbers = #tpu.dot_dimension_numbers<[1], [0], [0], [1], [0, 0, 1, 1], [], []>} : vector<16x16xbf16>, vector<16x8xbf16>, vector<16x8xf32> -> vector<16x8xf32>
    %133 = tpu.concatenate %63, %86, %109, %132 in 1 : vector<16x8xf32>, vector<16x8xf32>, vector<16x8xf32>, vector<16x8xf32> -> vector<16x32xf32>
    %134 = arith.truncf %133 : vector<16x32xf32> to vector<16x32xbf16>
    %c0_46 = arith.constant 0 : index
    %c0_47 = arith.constant 0 : index
    %c0_48 = arith.constant 0 : index
    %135 = vector.load %arg6[%c0_46, %c0_47, %c0_48] : memref<1x32x32xbf16, #tpu.memory_space<vmem>>, vector<1x32x32xbf16>
    %136 = vector.shape_cast %135 : vector<1x32x32xbf16> to vector<32x32xbf16>
    %cst_49 = arith.constant dense<0.000000e+00> : vector<16x32xf32>
    %137 = tpu.matmul %134, %136, %cst_49 {dimension_numbers = #tpu.dot_dimension_numbers<[1], [0], [0], [1], [0, 0, 1, 1], [], []>} : vector<16x32xbf16>, vector<32x32xbf16>, vector<16x32xf32> -> vector<16x32xf32>
    %c0_50 = arith.constant 0 : index
    %c0_51 = arith.constant 0 : index
    %c0_52 = arith.constant 0 : index
    %138 = vector.load %arg7[%c0_50, %c0_51, %c0_52] : memref<1x1x32xf32, #tpu.memory_space<vmem>>, vector<1x1x32xf32>
    %139 = vector.shape_cast %138 : vector<1x1x32xf32> to vector<1x32xf32>
    %140 = vector.broadcast %139 : vector<1x32xf32> to vector<16x32xf32>
    %141 = arith.addf %137, %140 : vector<16x32xf32>
    %142 = arith.addf %141, %30 : vector<16x32xf32>
    %c0_53 = arith.constant 0 : index
    %c0_54 = arith.constant 0 : index
    %c0_55 = arith.constant 0 : index
    %143 = vector.load %arg10[%c0_53, %c0_54, %c0_55] : memref<1x1x32xf32, #tpu.memory_space<vmem>>, vector<1x1x32xf32>
    %144 = vector.shape_cast %143 : vector<1x1x32xf32> to vector<1x32xf32>
    %c0_56 = arith.constant 0 : index
    %c0_57 = arith.constant 0 : index
    %c0_58 = arith.constant 0 : index
    %145 = vector.load %arg11[%c0_56, %c0_57, %c0_58] : memref<1x1x32xf32, #tpu.memory_space<vmem>>, vector<1x1x32xf32>
    %146 = vector.shape_cast %145 : vector<1x1x32xf32> to vector<1x32xf32>
    %cst_59 = arith.constant dense<0.000000e+00> : vector<16xf32>
    %147 = vector.multi_reduction <add>, %142, %cst_59 [1] : vector<16x32xf32> to vector<16xf32>
    %148 = vector.shape_cast %147 : vector<16xf32> to vector<16x1xf32>
    %cst_60 = arith.constant 3.200000e+01 : f32
    %149 = vector.broadcast %cst_60 : f32 to vector<16x1xf32>
    %150 = arith.divf %148, %149 : vector<16x1xf32>
    %151 = vector.broadcast %150 : vector<16x1xf32> to vector<16x32xf32>
    %152 = arith.subf %142, %151 : vector<16x32xf32>
    %153 = arith.mulf %152, %152 : vector<16x32xf32>
    %cst_61 = arith.constant dense<0.000000e+00> : vector<16xf32>
    %154 = vector.multi_reduction <add>, %153, %cst_61 [1] : vector<16x32xf32> to vector<16xf32>
    %155 = vector.shape_cast %154 : vector<16xf32> to vector<16x1xf32>
    %cst_62 = arith.constant 3.100000e+01 : f32
    %156 = vector.broadcast %cst_62 : f32 to vector<16x1xf32>
    %157 = arith.divf %155, %156 : vector<16x1xf32>
    %158 = math.sqrt %157 : vector<16x1xf32>
    %159 = vector.broadcast %150 : vector<16x1xf32> to vector<16x32xf32>
    %160 = arith.subf %142, %159 : vector<16x32xf32>
    %cst_63 = arith.constant 9.99999997E-7 : f32
    %161 = vector.broadcast %cst_63 : f32 to vector<16x1xf32>
    %162 = arith.addf %158, %161 : vector<16x1xf32>
    %163 = vector.broadcast %162 : vector<16x1xf32> to vector<16x32xf32>
    %164 = arith.divf %160, %163 : vector<16x32xf32>
    %165 = vector.broadcast %144 : vector<1x32xf32> to vector<16x32xf32>
    %166 = arith.mulf %165, %164 : vector<16x32xf32>
    %167 = vector.broadcast %146 : vector<1x32xf32> to vector<16x32xf32>
    %168 = arith.addf %166, %167 : vector<16x32xf32>
    %169 = arith.truncf %168 : vector<16x32xf32> to vector<16x32xbf16>
    %c0_64 = arith.constant 0 : index
    %c0_65 = arith.constant 0 : index
    %c0_66 = arith.constant 0 : index
    %170 = vector.load %arg12[%c0_64, %c0_65, %c0_66] : memref<1x32x128xbf16, #tpu.memory_space<vmem>>, vector<1x32x128xbf16>
    %171 = vector.shape_cast %170 : vector<1x32x128xbf16> to vector<32x128xbf16>
    %cst_67 = arith.constant dense<0.000000e+00> : vector<16x128xf32>
    %172 = tpu.matmul %169, %171, %cst_67 {dimension_numbers = #tpu.dot_dimension_numbers<[1], [0], [0], [1], [0, 0, 1, 1], [], []>} : vector<16x32xbf16>, vector<32x128xbf16>, vector<16x128xf32> -> vector<16x128xf32>
    %c0_68 = arith.constant 0 : index
    %c0_69 = arith.constant 0 : index
    %c0_70 = arith.constant 0 : index
    %173 = vector.load %arg13[%c0_68, %c0_69, %c0_70] : memref<1x1x128xf32, #tpu.memory_space<vmem>>, vector<1x1x128xf32>
    %174 = vector.shape_cast %173 : vector<1x1x128xf32> to vector<1x128xf32>
    %175 = vector.broadcast %174 : vector<1x128xf32> to vector<16x128xf32>
    %176 = arith.addf %172, %175 : vector<16x128xf32>
    %cst_71 = arith.constant 0.000000e+00 : f32
    %177 = vector.broadcast %cst_71 : f32 to vector<16x128xf32>
    %178 = arith.maximumf %176, %177 : vector<16x128xf32>
    %179 = arith.truncf %178 : vector<16x128xf32> to vector<16x128xbf16>
    %c0_72 = arith.constant 0 : index
    %c0_73 = arith.constant 0 : index
    %c0_74 = arith.constant 0 : index
    %180 = vector.load %arg14[%c0_72, %c0_73, %c0_74] : memref<1x128x32xbf16, #tpu.memory_space<vmem>>, vector<1x128x32xbf16>
    %181 = vector.shape_cast %180 : vector<1x128x32xbf16> to vector<128x32xbf16>
    %cst_75 = arith.constant dense<0.000000e+00> : vector<16x32xf32>
    %182 = tpu.matmul %179, %181, %cst_75 {dimension_numbers = #tpu.dot_dimension_numbers<[1], [0], [0], [1], [0, 0, 1, 1], [], []>} : vector<16x128xbf16>, vector<128x32xbf16>, vector<16x32xf32> -> vector<16x32xf32>
    %c0_76 = arith.constant 0 : index
    %c0_77 = arith.constant 0 : index
    %c0_78 = arith.constant 0 : index
    %183 = vector.load %arg15[%c0_76, %c0_77, %c0_78] : memref<1x1x32xf32, #tpu.memory_space<vmem>>, vector<1x1x32xf32>
    %184 = vector.shape_cast %183 : vector<1x1x32xf32> to vector<1x32xf32>
    %185 = vector.broadcast %184 : vector<1x32xf32> to vector<16x32xf32>
    %186 = arith.addf %182, %185 : vector<16x32xf32>
    %187 = arith.addf %186, %168 : vector<16x32xf32>
    %c0_79 = arith.constant 0 : index
    %c0_80 = arith.constant 0 : index
    %188 = vector.load %arg21[%c0_79, %c0_80] : memref<16x32xf32, #tpu.memory_space<vmem>>, vector<16x32xf32>
    tpu.vector_store %arg21[%c0_79, %c0_80], %187 {strides = array<i32>} : memref<16x32xf32, #tpu.memory_space<vmem>>, vector<16x32xf32>,
    %c1_i32 = arith.constant 1 : i32
    %189 = arith.cmpi eq, %arg0, %c1_i32 : i32
    %190 = arith.extui %189 : i1 to i32
    %c0_i32_81 = arith.constant 0 : i32
    %191 = arith.cmpi ne, %190, %c0_i32_81 : i32
    scf.if %191 {
      %c0_82 = arith.constant 0 : index
      %c0_83 = arith.constant 0 : index
      %192 = vector.load %arg16[%c0_82, %c0_83] : memref<1x32xf32, #tpu.memory_space<vmem>>, vector<1x32xf32>
      %c0_84 = arith.constant 0 : index
      %c0_85 = arith.constant 0 : index
      %193 = vector.load %arg17[%c0_84, %c0_85] : memref<1x32xf32, #tpu.memory_space<vmem>>, vector<1x32xf32>
      %cst_86 = arith.constant dense<0.000000e+00> : vector<16xf32>
      %194 = vector.multi_reduction <add>, %187, %cst_86 [1] : vector<16x32xf32> to vector<16xf32>
      %195 = vector.shape_cast %194 : vector<16xf32> to vector<16x1xf32>
      %cst_87 = arith.constant 3.200000e+01 : f32
      %196 = vector.broadcast %cst_87 : f32 to vector<16x1xf32>
      %197 = arith.divf %195, %196 : vector<16x1xf32>
      %198 = vector.broadcast %197 : vector<16x1xf32> to vector<16x32xf32>
      %199 = arith.subf %187, %198 : vector<16x32xf32>
      %200 = arith.mulf %199, %199 : vector<16x32xf32>
      %cst_88 = arith.constant dense<0.000000e+00> : vector<16xf32>
      %201 = vector.multi_reduction <add>, %200, %cst_88 [1] : vector<16x32xf32> to vector<16xf32>
      %202 = vector.shape_cast %201 : vector<16xf32> to vector<16x1xf32>
      %cst_89 = arith.constant 3.100000e+01 : f32
      %203 = vector.broadcast %cst_89 : f32 to vector<16x1xf32>
      %204 = arith.divf %202, %203 : vector<16x1xf32>
      %205 = math.sqrt %204 : vector<16x1xf32>
      %206 = vector.broadcast %197 : vector<16x1xf32> to vector<16x32xf32>
      %207 = arith.subf %187, %206 : vector<16x32xf32>
      %cst_90 = arith.constant 9.99999997E-7 : f32
      %208 = vector.broadcast %cst_90 : f32 to vector<16x1xf32>
      %209 = arith.addf %205, %208 : vector<16x1xf32>
      %210 = vector.broadcast %209 : vector<16x1xf32> to vector<16x32xf32>
      %211 = arith.divf %207, %210 : vector<16x32xf32>
      %212 = vector.broadcast %192 : vector<1x32xf32> to vector<16x32xf32>
      %213 = arith.mulf %212, %211 : vector<16x32xf32>
      %214 = vector.broadcast %193 : vector<1x32xf32> to vector<16x32xf32>
      %215 = arith.addf %213, %214 : vector<16x32xf32>
      %216 = arith.truncf %215 : vector<16x32xf32> to vector<16x32xbf16>
      %c0_91 = arith.constant 0 : index
      %c0_92 = arith.constant 0 : index
      %217 = vector.load %arg18[%c0_91, %c0_92] : memref<32x128xbf16, #tpu.memory_space<vmem>>, vector<32x128xbf16>
      %cst_93 = arith.constant dense<0.000000e+00> : vector<16x128xf32>
      %218 = tpu.matmul %216, %217, %cst_93 {dimension_numbers = #tpu.dot_dimension_numbers<[1], [0], [0], [1], [0, 0, 1, 1], [], []>} : vector<16x32xbf16>, vector<32x128xbf16>, vector<16x128xf32> -> vector<16x128xf32>
      %c0_94 = arith.constant 0 : index
      %c0_95 = arith.constant 0 : index
      %219 = vector.load %arg19[%c0_94, %c0_95] : memref<1x128xf32, #tpu.memory_space<vmem>>, vector<1x128xf32>
      %220 = vector.broadcast %219 : vector<1x128xf32> to vector<16x128xf32>
      %221 = arith.addf %218, %220 : vector<16x128xf32>
      %c0_96 = arith.constant 0 : index
      %c0_97 = arith.constant 0 : index
      %222 = vector.load %arg20[%c0_96, %c0_97] : memref<16x128xf32, #tpu.memory_space<vmem>>, vector<16x128xf32>
      tpu.vector_store %arg20[%c0_96, %c0_97], %221 {strides = array<i32>} : memref<16x128xf32, #tpu.memory_space<vmem>>, vector<16x128xf32>,
    } else {
    }
    return
  }
  func.func @transform_0(%arg0: i32) -> (i32, i32) {
    %c0_i32 = arith.constant 0 : i32
    %c0_i32_0 = arith.constant 0 : i32
    %c0_i32_1 = arith.constant 0 : i32
    return %c0_i32, %c0_i32_0 : i32, i32
  }
  func.func @transform_1(%arg0: i32) -> (i32, i32) {
    %c0_i32 = arith.constant 0 : i32
    %c0_i32_0 = arith.constant 0 : i32
    %c0_i32_1 = arith.constant 0 : i32
    return %c0_i32, %c0_i32_0 : i32, i32
  }
  func.func @transform_2(%arg0: i32) -> (i32, i32, i32) {
    %c0_i32 = arith.constant 0 : i32
    %c0_i32_0 = arith.constant 0 : i32
    %c0_i32_1 = arith.constant 0 : i32
    return %arg0, %c0_i32, %c0_i32_0 : i32, i32, i32
  }
  func.func @transform_3(%arg0: i32) -> (i32, i32, i32) {
    %c0_i32 = arith.constant 0 : i32
    %c0_i32_0 = arith.constant 0 : i32
    %c0_i32_1 = arith.constant 0 : i32
    return %arg0, %c0_i32, %c0_i32_0 : i32, i32, i32
  }
  func.func @transform_4(%arg0: i32) -> (i32, i32, i32) {
    %c0_i32 = arith.constant 0 : i32
    %c0_i32_0 = arith.constant 0 : i32
    %c0_i32_1 = arith.constant 0 : i32
    return %arg0, %c0_i32, %c0_i32_0 : i32, i32, i32
  }
  func.func @transform_5(%arg0: i32) -> (i32, i32, i32) {
    %c0_i32 = arith.constant 0 : i32
    %c0_i32_0 = arith.constant 0 : i32
    %c0_i32_1 = arith.constant 0 : i32
    return %arg0, %c0_i32, %c0_i32_0 : i32, i32, i32
  }
  func.func @transform_6(%arg0: i32) -> (i32, i32, i32) {
    %c0_i32 = arith.constant 0 : i32
    %c0_i32_0 = arith.constant 0 : i32
    %c0_i32_1 = arith.constant 0 : i32
    return %arg0, %c0_i32, %c0_i32_0 : i32, i32, i32
  }
  func.func @transform_7(%arg0: i32) -> (i32, i32, i32) {
    %c0_i32 = arith.constant 0 : i32
    %c0_i32_0 = arith.constant 0 : i32
    %c0_i32_1 = arith.constant 0 : i32
    return %arg0, %c0_i32, %c0_i32_0 : i32, i32, i32
  }
  func.func @transform_8(%arg0: i32) -> (i32, i32, i32) {
    %c0_i32 = arith.constant 0 : i32
    %c0_i32_0 = arith.constant 0 : i32
    %c0_i32_1 = arith.constant 0 : i32
    return %arg0, %c0_i32, %c0_i32_0 : i32, i32, i32
  }
  func.func @transform_9(%arg0: i32) -> (i32, i32, i32) {
    %c0_i32 = arith.constant 0 : i32
    %c0_i32_0 = arith.constant 0 : i32
    %c0_i32_1 = arith.constant 0 : i32
    return %arg0, %c0_i32, %c0_i32_0 : i32, i32, i32
  }
  func.func @transform_10(%arg0: i32) -> (i32, i32, i32) {
    %c0_i32 = arith.constant 0 : i32
    %c0_i32_0 = arith.constant 0 : i32
    %c0_i32_1 = arith.constant 0 : i32
    return %arg0, %c0_i32, %c0_i32_0 : i32, i32, i32
  }
  func.func @transform_11(%arg0: i32) -> (i32, i32, i32) {
    %c0_i32 = arith.constant 0 : i32
    %c0_i32_0 = arith.constant 0 : i32
    %c0_i32_1 = arith.constant 0 : i32
    return %arg0, %c0_i32, %c0_i32_0 : i32, i32, i32
  }
  func.func @transform_12(%arg0: i32) -> (i32, i32, i32) {
    %c0_i32 = arith.constant 0 : i32
    %c0_i32_0 = arith.constant 0 : i32
    %c0_i32_1 = arith.constant 0 : i32
    return %arg0, %c0_i32, %c0_i32_0 : i32, i32, i32
  }
  func.func @transform_13(%arg0: i32) -> (i32, i32, i32) {
    %c0_i32 = arith.constant 0 : i32
    %c0_i32_0 = arith.constant 0 : i32
    %c0_i32_1 = arith.constant 0 : i32
    return %arg0, %c0_i32, %c0_i32_0 : i32, i32, i32
  }
  func.func @transform_14(%arg0: i32) -> (i32, i32, i32) {
    %c0_i32 = arith.constant 0 : i32
    %c0_i32_0 = arith.constant 0 : i32
    %c0_i32_1 = arith.constant 0 : i32
    return %arg0, %c0_i32, %c0_i32_0 : i32, i32, i32
  }
  func.func @transform_15(%arg0: i32) -> (i32, i32) {
    %c0_i32 = arith.constant 0 : i32
    %c0_i32_0 = arith.constant 0 : i32
    %c0_i32_1 = arith.constant 0 : i32
    return %c0_i32, %c0_i32_0 : i32, i32
  }
  func.func @transform_16(%arg0: i32) -> (i32, i32) {
    %c0_i32 = arith.constant 0 : i32
    %c0_i32_0 = arith.constant 0 : i32
    %c0_i32_1 = arith.constant 0 : i32
    return %c0_i32, %c0_i32_0 : i32, i32
  }
  func.func @transform_17(%arg0: i32) -> (i32, i32) {
    %c0_i32 = arith.constant 0 : i32
    %c0_i32_0 = arith.constant 0 : i32
    %c0_i32_1 = arith.constant 0 : i32
    return %c0_i32, %c0_i32_0 : i32, i32
  }
  func.func @transform_18(%arg0: i32) -> (i32, i32) {
    %c0_i32 = arith.constant 0 : i32
    %c0_i32_0 = arith.constant 0 : i32
    %c0_i32_1 = arith.constant 0 : i32
    return %c0_i32, %c0_i32_0 : i32, i32
  }
  func.func @transform_19(%arg0: i32) -> (i32, i32) {
    %c0_i32 = arith.constant 0 : i32
    %c0_i32_0 = arith.constant 0 : i32
    %c0_i32_1 = arith.constant 0 : i32
    return %c0_i32, %c0_i32_0 : i32, i32
  }
}

</mosaic_0001>

<llo_original>
// kernel: tpu_custom_call.1
$region0: #{tpu_custom_call.1}
  #allocation0 [shape = 'u32[]', space=smem, size = 0x4, offset = 0x4, fixed_abs, tag = 'smem constant byte address 0x4 - core index']
  #allocation1 [shape = 'u32[72,128]{1,0:T(1,128)}', space=vmem, size = 0x9000, scoped, tag = 'internal scratch']
  #allocation2 [shape = 'f32[16,32]{1,0:T(8,128)}', space=vmem, size = 0x2000, scoped, tag = 'scratch operand']
  %s0 = inlined_call_operand.hbm [shape: f32[16,32], index: 0, kind: input, shape index: {}]
  %s1 = inlined_call_operand.hbm [shape: f32[16,16], index: 1, kind: input, shape index: {}]
  %s2 = inlined_call_operand.vmem [shape: bf16[2,32,32], index: 2, kind: input, shape index: {}]
  %s3 = inlined_call_operand.vmem [shape: bf16[2,32,32], index: 3, kind: input, shape index: {}]
  %s4 = inlined_call_operand.vmem [shape: bf16[2,32,32], index: 4, kind: input, shape index: {}]
  %s5 = inlined_call_operand.vmem [shape: bf16[2,32,32], index: 5, kind: input, shape index: {}]
  %s6 = inlined_call_operand.vmem [shape: f32[2,1,32], index: 6, kind: input, shape index: {}]
  %s7 = inlined_call_operand.vmem [shape: f32[2,1,32], index: 7, kind: input, shape index: {}]
  %s8 = inlined_call_operand.vmem [shape: f32[2,1,32], index: 8, kind: input, shape index: {}]
  %s9 = inlined_call_operand.hbm [shape: f32[2,1,32], index: 9, kind: input, shape index: {}]
  %s10 = inlined_call_operand.vmem [shape: f32[2,1,32], index: 10, kind: input, shape index: {}]
  %s11 = inlined_call_operand.vmem [shape: bf16[2,32,128], index: 11, kind: input, shape index: {}]
  %s12 = inlined_call_operand.vmem [shape: f32[2,1,128], index: 12, kind: input, shape index: {}]
  %s13 = inlined_call_operand.vmem [shape: bf16[2,128,32], index: 13, kind: input, shape index: {}]
  %s14 = inlined_call_operand.vmem [shape: f32[2,1,32], index: 14, kind: input, shape index: {}]
  %s15 = inlined_call_operand.vmem [shape: f32[1,32], index: 15, kind: input, shape index: {}]
  %s16 = inlined_call_operand.vmem [shape: f32[1,32], index: 16, kind: input, shape index: {}]
  %s17 = inlined_call_operand.hbm [shape: bf16[32,128], index: 17, kind: input, shape index: {}]
  %s18 = inlined_call_operand.vmem [shape: f32[1,128], index: 18, kind: input, shape index: {}]
  %s19 = inlined_call_operand.hbm [shape: f32[16,128], index: 19, kind: output, shape index: {}]
  %s20 = sld [smem:[#allocation0]]
  $region133: #{tpu_custom_call.1} parent=0
    _
  %s22 = ssub.s32 1, %s20
  %s23 = scalar_select 0, %s22, %s20
  $region1: #{tpu_custom_call.1} parent=0
    #allocation3 [shape = 'u8[8192]{0}', space=vmem, size = 0x2000, scoped, tag = 'input window, operand 0, single buffered']
    #allocation4 [shape = 's32[2]{0}', space=sflag, size = 0x8, scoped, tag = 'scoped memory for tpu_custom_call.1']
    #allocation5 [shape = 's32[2]{0}', space=sflag, size = 0x8, scoped, tag = 'scoped memory for tpu_custom_call.1']
    #allocation6 [shape = 'u8[8192]{0}', space=vmem, size = 0x2000, scoped, tag = 'input window, operand 1, single buffered']
    #allocation7 [shape = 's32[1]{0}', space=sflag, size = 0x4, scoped, tag = 'scoped memory for tpu_custom_call.1']
    #allocation8 [shape = 'u8[1024]{0}', space=vmem, size = 0x400, scoped, tag = 'input window, operand 9']
    #allocation9 [shape = 'u8[8192]{0}', space=vmem, size = 0x2000, scoped, tag = 'input window, operand 17, single buffered']
    #allocation10 [shape = 'u8[8192]{0}', space=vmem, size = 0x2000, scoped, tag = 'output window, operand 0, single buffered']
    %24 = vsyncpa [#allocation4], 0
    %25 = vsyncpa [#allocation7], 0
    %26 = vsyncpa [#allocation5], 0
    loop: start=0, step=1, limit=4
    $region2: #{tpu_custom_call.1} parent=1 // loop_pre_header
      _
    $region3: #{tpu_custom_call.1} parent=1 // loop_header
      %s28 = sphi 0, %s32
      %p29 = scmp.ge.s32.totalorder %s28, 4
      %s36 = sphi 0, %s36
      %s38 = sphi 0, %s36
      %s39 = sphi 0, %s38
      %s53 = sphi 0, %s39
      %s57 = sphi 0, %s57
      %s59 = sphi 0, %s57
      %s60 = sphi 0, %s59
      %s74 = sphi 0, %s60
      %s80 = sphi 0, %s82
      %s83 = sphi 0, %s80
      %s84 = sphi 0, %s83
      %s100 = sphi 0, %s84
      %s106 = sphi 0, %s108
      %s109 = sphi 0, %s106
      %s110 = sphi 0, %s109
      %s126 = sphi 0, %s110
      %s132 = sphi 0, %s134
      %s135 = sphi 0, %s132
      %s136 = sphi 0, %s135
      %s152 = sphi 0, %s136
      %s158 = sphi 0, %s160
      %s161 = sphi 0, %s158
      %s162 = sphi 0, %s161
      %s178 = sphi 0, %s162
      %s184 = sphi 0, %s186
      %s187 = sphi 0, %s184
      %s188 = sphi 0, %s187
      %s204 = sphi 0, %s188
      %s210 = sphi 0, %s212
      %s213 = sphi 0, %s210
      %s214 = sphi 0, %s213
      %s230 = sphi 0, %s214
      %s236 = sphi 0, %s238
      %s239 = sphi 0, %s236
      %s240 = sphi 0, %s239
      %s256 = sphi 0, %s240
      %s262 = sphi 0, %s264
      %s265 = sphi 0, %s262
      %s266 = sphi 0, %s265
      %s282 = sphi 0, %s266
      %s288 = sphi 0, %s290
      %s291 = sphi 0, %s288
      %s292 = sphi 0, %s291
      %s308 = sphi 0, %s292
      %s314 = sphi 0, %s316
      %s317 = sphi 0, %s314
      %s318 = sphi 0, %s317
      %s334 = sphi 0, %s318
      %s340 = sphi 0, %s342
      %s343 = sphi 0, %s340
      %s344 = sphi 0, %s343
      %s360 = sphi 0, %s344
      %s366 = sphi 0, %s368
      %s369 = sphi 0, %s366
      %s370 = sphi 0, %s369
      %s386 = sphi 0, %s370
      %s392 = sphi 0, %s394
      %s395 = sphi 0, %s392
      %s396 = sphi 0, %s395
      %s412 = sphi 0, %s396
      %s416 = sphi 0, %s416
      %s418 = sphi 0, %s416
      %s419 = sphi 0, %s418
      %s433 = sphi 0, %s419
      %s437 = sphi 0, %s437
      %s439 = sphi 0, %s437
      %s440 = sphi 0, %s439
      %s454 = sphi 0, %s440
      %s458 = sphi 0, %s458
      %s460 = sphi 0, %s458
      %s461 = sphi 0, %s460
      %s475 = sphi 0, %s461
      %s479 = sphi 0, %s479
      %s481 = sphi 0, %s479
      %s482 = sphi 0, %s481
      %s496 = sphi 0, %s482
      %s500 = sphi 0, %s500
      %s502 = sphi 0, %s500
      %s503 = sphi 0, %s502
      %s517 = sphi 0, %s503
    $region4: #{tpu_custom_call.1} parent=1 // loop_header_branch
      %31 = sbr.rel (%p29) target = $region8
    $region5: #{tpu_custom_call.1} parent=1 // loop_body
      %s33 = ssub.s32 %s28, 1
      %s34 = ssub.s32 %s28, 2
      %s35 = sadd.s32 %s28, 1
      %s37 = sadd.s32 %s36, 1
      %p40 = scmp.eq.s32.totalorder %s28, 1
      %p41 = scmp.ne.s32.totalorder %s36, %s38
      %p42 = scmp.eq.s32.totalorder %s28, 0
      %p43 = por %p41, %p42
      %p44 = scmp.ne.s32.totalorder %s36, %s38
      %p45 = scmp.eq.s32.totalorder %s33, 1
      %p46 = por %p44, %p45
      %p47 = scmp.ne.s32.totalorder %s38, %s39
      %p48 = scmp.eq.s32.totalorder %s33, 0
      %p49 = por %p47, %p48
      %p50 = scmp.ne.s32.totalorder %s38, %s39
      %p51 = scmp.eq.s32.totalorder %s34, 1
      %p52 = por %p50, %p51
      %p54 = scmp.ne.s32.totalorder %s39, %s53
      %p55 = scmp.eq.s32.totalorder %s34, 0
      %p56 = por %p54, %p55
      %s58 = sadd.s32 %s57, 1
      %p61 = scmp.eq.s32.totalorder %s28, 1
      %p62 = scmp.ne.s32.totalorder %s57, %s59
      %p63 = scmp.eq.s32.totalorder %s28, 0
      %p64 = por %p62, %p63
      %p65 = scmp.ne.s32.totalorder %s57, %s59
      %p66 = scmp.eq.s32.totalorder %s33, 1
      %p67 = por %p65, %p66
      %p68 = scmp.ne.s32.totalorder %s59, %s60
      %p69 = scmp.eq.s32.totalorder %s33, 0
      %p70 = por %p68, %p69
      %p71 = scmp.ne.s32.totalorder %s59, %s60
      %p72 = scmp.eq.s32.totalorder %s34, 1
      %p73 = por %p71, %p72
      %p75 = scmp.ne.s32.totalorder %s60, %s74
      %p76 = scmp.eq.s32.totalorder %s34, 0
      %p77 = por %p75, %p76
      %s78 = ssub.s32 %s28, %s35
      %p79 = scmp.eq.s32.totalorder %s78, 0
      %s81 = sadd.s32 %s80, 1
      %s82 = scalar_select %p79, %s80, %s81
      %p85 = pneg %p79
      %p86 = scmp.eq.s32.totalorder %s28, 1
      %p87 = por %p85, %p86
      %p88 = scmp.ne.s32.totalorder %s80, %s83
      %p89 = scmp.eq.s32.totalorder %s28, 0
      %p90 = por %p88, %p89
      %p91 = scmp.ne.s32.totalorder %s80, %s83
      %p92 = scmp.eq.s32.totalorder %s33, 1
      %p93 = por %p91, %p92
      %p94 = scmp.ne.s32.totalorder %s83, %s84
      %p95 = scmp.eq.s32.totalorder %s33, 0
      %p96 = por %p94, %p95
      %p97 = scmp.ne.s32.totalorder %s83, %s84
      %p98 = scmp.eq.s32.totalorder %s34, 1
      %p99 = por %p97, %p98
      %p101 = scmp.ne.s32.totalorder %s84, %s100
      %p102 = scmp.eq.s32.totalorder %s34, 0
      %p103 = por %p101, %p102
      %s104 = ssub.s32 %s28, %s35
      %p105 = scmp.eq.s32.totalorder %s104, 0
      %s107 = sadd.s32 %s106, 1
      %s108 = scalar_select %p105, %s106, %s107
      %p111 = pneg %p105
      %p112 = scmp.eq.s32.totalorder %s28, 1
      %p113 = por %p111, %p112
      %p114 = scmp.ne.s32.totalorder %s106, %s109
      %p115 = scmp.eq.s32.totalorder %s28, 0
      %p116 = por %p114, %p115
      %p117 = scmp.ne.s32.totalorder %s106, %s109
      %p118 = scmp.eq.s32.totalorder %s33, 1
      %p119 = por %p117, %p118
      %p120 = scmp.ne.s32.totalorder %s109, %s110
      %p121 = scmp.eq.s32.totalorder %s33, 0
      %p122 = por %p120, %p121
      %p123 = scmp.ne.s32.totalorder %s109, %s110
      %p124 = scmp.eq.s32.totalorder %s34, 1
      %p125 = por %p123, %p124
      %p127 = scmp.ne.s32.totalorder %s110, %s126
      %p128 = scmp.eq.s32.totalorder %s34, 0
      %p129 = por %p127, %p128
      %s130 = ssub.s32 %s28, %s35
      %p131 = scmp.eq.s32.totalorder %s130, 0
      %s133 = sadd.s32 %s132, 1
      %s134 = scalar_select %p131, %s132, %s133
      %p137 = pneg %p131
      %p138 = scmp.eq.s32.totalorder %s28, 1
      %p139 = por %p137, %p138
      %p140 = scmp.ne.s32.totalorder %s132, %s135
      %p141 = scmp.eq.s32.totalorder %s28, 0
      %p142 = por %p140, %p141
      %p143 = scmp.ne.s32.totalorder %s132, %s135
      %p144 = scmp.eq.s32.totalorder %s33, 1
      %p145 = por %p143, %p144
      %p146 = scmp.ne.s32.totalorder %s135, %s136
      %p147 = scmp.eq.s32.totalorder %s33, 0
      %p148 = por %p146, %p147
      %p149 = scmp.ne.s32.totalorder %s135, %s136
      %p150 = scmp.eq.s32.totalorder %s34, 1
      %p151 = por %p149, %p150
      %p153 = scmp.ne.s32.totalorder %s136, %s152
      %p154 = scmp.eq.s32.totalorder %s34, 0
      %p155 = por %p153, %p154
      %s156 = ssub.s32 %s28, %s35
      %p157 = scmp.eq.s32.totalorder %s156, 0
      %s159 = sadd.s32 %s158, 1
      %s160 = scalar_select %p157, %s158, %s159
      %p163 = pneg %p157
      %p164 = scmp.eq.s32.totalorder %s28, 1
      %p165 = por %p163, %p164
      %p166 = scmp.ne.s32.totalorder %s158, %s161
      %p167 = scmp.eq.s32.totalorder %s28, 0
      %p168 = por %p166, %p167
      %p169 = scmp.ne.s32.totalorder %s158, %s161
      %p170 = scmp.eq.s32.totalorder %s33, 1
      %p171 = por %p169, %p170
      %p172 = scmp.ne.s32.totalorder %s161, %s162
      %p173 = scmp.eq.s32.totalorder %s33, 0
      %p174 = por %p172, %p173
      %p175 = scmp.ne.s32.totalorder %s161, %s162
      %p176 = scmp.eq.s32.totalorder %s34, 1
      %p177 = por %p175, %p176
      %p179 = scmp.ne.s32.totalorder %s162, %s178
      %p180 = scmp.eq.s32.totalorder %s34, 0
      %p181 = por %p179, %p180
      %s182 = ssub.s32 %s28, %s35
      %p183 = scmp.eq.s32.totalorder %s182, 0
      %s185 = sadd.s32 %s184, 1
      %s186 = scalar_select %p183, %s184, %s185
      %p189 = pneg %p183
      %p190 = scmp.eq.s32.totalorder %s28, 1
      %p191 = por %p189, %p190
      %p192 = scmp.ne.s32.totalorder %s184, %s187
      %p193 = scmp.eq.s32.totalorder %s28, 0
      %p194 = por %p192, %p193
      %p195 = scmp.ne.s32.totalorder %s184, %s187
      %p196 = scmp.eq.s32.totalorder %s33, 1
      %p197 = por %p195, %p196
      %p198 = scmp.ne.s32.totalorder %s187, %s188
      %p199 = scmp.eq.s32.totalorder %s33, 0
      %p200 = por %p198, %p199
      %p201 = scmp.ne.s32.totalorder %s187, %s188
      %p202 = scmp.eq.s32.totalorder %s34, 1
      %p203 = por %p201, %p202
      %p205 = scmp.ne.s32.totalorder %s188, %s204
      %p206 = scmp.eq.s32.totalorder %s34, 0
      %p207 = por %p205, %p206
      %s208 = ssub.s32 %s28, %s35
      %p209 = scmp.eq.s32.totalorder %s208, 0
      %s211 = sadd.s32 %s210, 1
      %s212 = scalar_select %p209, %s210, %s211
      %p215 = pneg %p209
      %p216 = scmp.eq.s32.totalorder %s28, 1
      %p217 = por %p215, %p216
      %p218 = scmp.ne.s32.totalorder %s210, %s213
      %p219 = scmp.eq.s32.totalorder %s28, 0
      %p220 = por %p218, %p219
      %p221 = scmp.ne.s32.totalorder %s210, %s213
      %p222 = scmp.eq.s32.totalorder %s33, 1
      %p223 = por %p221, %p222
      %p224 = scmp.ne.s32.totalorder %s213, %s214
      %p225 = scmp.eq.s32.totalorder %s33, 0
      %p226 = por %p224, %p225
      %p227 = scmp.ne.s32.totalorder %s213, %s214
      %p228 = scmp.eq.s32.totalorder %s34, 1
      %p229 = por %p227, %p228
      %p231 = scmp.ne.s32.totalorder %s214, %s230
      %p232 = scmp.eq.s32.totalorder %s34, 0
      %p233 = por %p231, %p232
      %s234 = ssub.s32 %s28, %s35
      %p235 = scmp.eq.s32.totalorder %s234, 0
      %s237 = sadd.s32 %s236, 1
      %s238 = scalar_select %p235, %s236, %s237
      %p241 = pneg %p235
      %p242 = scmp.eq.s32.totalorder %s28, 1
      %p243 = por %p241, %p242
      %p244 = scmp.ne.s32.totalorder %s236, %s239
      %p245 = scmp.eq.s32.totalorder %s28, 0
      %p246 = por %p244, %p245
      %p247 = scmp.ne.s32.totalorder %s236, %s239
      %p248 = scmp.eq.s32.totalorder %s33, 1
      %p249 = por %p247, %p248
      %p250 = scmp.ne.s32.totalorder %s239, %s240
      %p251 = scmp.eq.s32.totalorder %s33, 0
      %p252 = por %p250, %p251
      %p253 = scmp.ne.s32.totalorder %s239, %s240
      %p254 = scmp.eq.s32.totalorder %s34, 1
      %p255 = por %p253, %p254
      %p257 = scmp.ne.s32.totalorder %s240, %s256
      %p258 = scmp.eq.s32.totalorder %s34, 0
      %p259 = por %p257, %p258
      %s260 = ssub.s32 %s28, %s35
      %p261 = scmp.eq.s32.totalorder %s260, 0
      %s263 = sadd.s32 %s262, 1
      %s264 = scalar_select %p261, %s262, %s263
      %p267 = pneg %p261
      %p268 = scmp.eq.s32.totalorder %s28, 1
      %p269 = por %p267, %p268
      %p270 = scmp.ne.s32.totalorder %s262, %s265
      %p271 = scmp.eq.s32.totalorder %s28, 0
      %p272 = por %p270, %p271
      %p273 = scmp.ne.s32.totalorder %s262, %s265
      %p274 = scmp.eq.s32.totalorder %s33, 1
      %p275 = por %p273, %p274
      %p276 = scmp.ne.s32.totalorder %s265, %s266
      %p277 = scmp.eq.s32.totalorder %s33, 0
      %p278 = por %p276, %p277
      %p279 = scmp.ne.s32.totalorder %s265, %s266
      %p280 = scmp.eq.s32.totalorder %s34, 1
      %p281 = por %p279, %p280
      %p283 = scmp.ne.s32.totalorder %s266, %s282
      %p284 = scmp.eq.s32.totalorder %s34, 0
      %p285 = por %p283, %p284
      %s286 = ssub.s32 %s28, %s35
      %p287 = scmp.eq.s32.totalorder %s286, 0
      %s289 = sadd.s32 %s288, 1
      %s290 = scalar_select %p287, %s288, %s289
      %p293 = pneg %p287
      %p294 = scmp.eq.s32.totalorder %s28, 1
      %p295 = por %p293, %p294
      %p296 = scmp.ne.s32.totalorder %s288, %s291
      %p297 = scmp.eq.s32.totalorder %s28, 0
      %p298 = por %p296, %p297
      %p299 = scmp.ne.s32.totalorder %s288, %s291
      %p300 = scmp.eq.s32.totalorder %s33, 1
      %p301 = por %p299, %p300
      %p302 = scmp.ne.s32.totalorder %s291, %s292
      %p303 = scmp.eq.s32.totalorder %s33, 0
      %p304 = por %p302, %p303
      %p305 = scmp.ne.s32.totalorder %s291, %s292
      %p306 = scmp.eq.s32.totalorder %s34, 1
      %p307 = por %p305, %p306
      %p309 = scmp.ne.s32.totalorder %s292, %s308
      %p310 = scmp.eq.s32.totalorder %s34, 0
      %p311 = por %p309, %p310
      %s312 = ssub.s32 %s28, %s35
      %p313 = scmp.eq.s32.totalorder %s312, 0
      %s315 = sadd.s32 %s314, 1
      %s316 = scalar_select %p313, %s314, %s315
      %p319 = pneg %p313
      %p320 = scmp.eq.s32.totalorder %s28, 1
      %p321 = por %p319, %p320
      %p322 = scmp.ne.s32.totalorder %s314, %s317
      %p323 = scmp.eq.s32.totalorder %s28, 0
      %p324 = por %p322, %p323
      %p325 = scmp.ne.s32.totalorder %s314, %s317
      %p326 = scmp.eq.s32.totalorder %s33, 1
      %p327 = por %p325, %p326
      %p328 = scmp.ne.s32.totalorder %s317, %s318
      %p329 = scmp.eq.s32.totalorder %s33, 0
      %p330 = por %p328, %p329
      %p331 = scmp.ne.s32.totalorder %s317, %s318
      %p332 = scmp.eq.s32.totalorder %s34, 1
      %p333 = por %p331, %p332
      %p335 = scmp.ne.s32.totalorder %s318, %s334
      %p336 = scmp.eq.s32.totalorder %s34, 0
      %p337 = por %p335, %p336
      %s338 = ssub.s32 %s28, %s35
      %p339 = scmp.eq.s32.totalorder %s338, 0
      %s341 = sadd.s32 %s340, 1
      %s342 = scalar_select %p339, %s340, %s341
      %p345 = pneg %p339
      %p346 = scmp.eq.s32.totalorder %s28, 1
      %p347 = por %p345, %p346
      %p348 = scmp.ne.s32.totalorder %s340, %s343
      %p349 = scmp.eq.s32.totalorder %s28, 0
      %p350 = por %p348, %p349
      %p351 = scmp.ne.s32.totalorder %s340, %s343
      %p352 = scmp.eq.s32.totalorder %s33, 1
      %p353 = por %p351, %p352
      %p354 = scmp.ne.s32.totalorder %s343, %s344
      %p355 = scmp.eq.s32.totalorder %s33, 0
      %p356 = por %p354, %p355
      %p357 = scmp.ne.s32.totalorder %s343, %s344
      %p358 = scmp.eq.s32.totalorder %s34, 1
      %p359 = por %p357, %p358
      %p361 = scmp.ne.s32.totalorder %s344, %s360
      %p362 = scmp.eq.s32.totalorder %s34, 0
      %p363 = por %p361, %p362
      %s364 = ssub.s32 %s28, %s35
      %p365 = scmp.eq.s32.totalorder %s364, 0
      %s367 = sadd.s32 %s366, 1
      %s368 = scalar_select %p365, %s366, %s367
      %p371 = pneg %p365
      %p372 = scmp.eq.s32.totalorder %s28, 1
      %p373 = por %p371, %p372
      %p374 = scmp.ne.s32.totalorder %s366, %s369
      %p375 = scmp.eq.s32.totalorder %s28, 0
      %p376 = por %p374, %p375
      %p377 = scmp.ne.s32.totalorder %s366, %s369
      %p378 = scmp.eq.s32.totalorder %s33, 1
      %p379 = por %p377, %p378
      %p380 = scmp.ne.s32.totalorder %s369, %s370
      %p381 = scmp.eq.s32.totalorder %s33, 0
      %p382 = por %p380, %p381
      %p383 = scmp.ne.s32.totalorder %s369, %s370
      %p384 = scmp.eq.s32.totalorder %s34, 1
      %p385 = por %p383, %p384
      %p387 = scmp.ne.s32.totalorder %s370, %s386
      %p388 = scmp.eq.s32.totalorder %s34, 0
      %p389 = por %p387, %p388
      %s390 = ssub.s32 %s28, %s35
      %p391 = scmp.eq.s32.totalorder %s390, 0
      %s393 = sadd.s32 %s392, 1
      %s394 = scalar_select %p391, %s392, %s393
      %p397 = pneg %p391
      %p398 = scmp.eq.s32.totalorder %s28, 1
      %p399 = por %p397, %p398
      %p400 = scmp.ne.s32.totalorder %s392, %s395
      %p401 = scmp.eq.s32.totalorder %s28, 0
      %p402 = por %p400, %p401
      %p403 = scmp.ne.s32.totalorder %s392, %s395
      %p404 = scmp.eq.s32.totalorder %s33, 1
      %p405 = por %p403, %p404
      %p406 = scmp.ne.s32.totalorder %s395, %s396
      %p407 = scmp.eq.s32.totalorder %s33, 0
      %p408 = por %p406, %p407
      %p409 = scmp.ne.s32.totalorder %s395, %s396
      %p410 = scmp.eq.s32.totalorder %s34, 1
      %p411 = por %p409, %p410
      %p413 = scmp.ne.s32.totalorder %s396, %s412
      %p414 = scmp.eq.s32.totalorder %s34, 0
      %p415 = por %p413, %p414
      %s417 = sadd.s32 %s416, 1
      %p420 = scmp.eq.s32.totalorder %s28, 1
      %p421 = scmp.ne.s32.totalorder %s416, %s418
      %p422 = scmp.eq.s32.totalorder %s28, 0
      %p423 = por %p421, %p422
      %p424 = scmp.ne.s32.totalorder %s416, %s418
      %p425 = scmp.eq.s32.totalorder %s33, 1
      %p426 = por %p424, %p425
      %p427 = scmp.ne.s32.totalorder %s418, %s419
      %p428 = scmp.eq.s32.totalorder %s33, 0
      %p429 = por %p427, %p428
      %p430 = scmp.ne.s32.totalorder %s418, %s419
      %p431 = scmp.eq.s32.totalorder %s34, 1
      %p432 = por %p430, %p431
      %p434 = scmp.ne.s32.totalorder %s419, %s433
      %p435 = scmp.eq.s32.totalorder %s34, 0
      %p436 = por %p434, %p435
      %s438 = sadd.s32 %s437, 1
      %p441 = scmp.eq.s32.totalorder %s28, 1
      %p442 = scmp.ne.s32.totalorder %s437, %s439
      %p443 = scmp.eq.s32.totalorder %s28, 0
      %p444 = por %p442, %p443
      %p445 = scmp.ne.s32.totalorder %s437, %s439
      %p446 = scmp.eq.s32.totalorder %s33, 1
      %p447 = por %p445, %p446
      %p448 = scmp.ne.s32.totalorder %s439, %s440
      %p449 = scmp.eq.s32.totalorder %s33, 0
      %p450 = por %p448, %p449
      %p451 = scmp.ne.s32.totalorder %s439, %s440
      %p452 = scmp.eq.s32.totalorder %s34, 1
      %p453 = por %p451, %p452
      %p455 = scmp.ne.s32.totalorder %s440, %s454
      %p456 = scmp.eq.s32.totalorder %s34, 0
      %p457 = por %p455, %p456
      %s459 = sadd.s32 %s458, 1
      %p462 = scmp.eq.s32.totalorder %s28, 1
      %p463 = scmp.ne.s32.totalorder %s458, %s460
      %p464 = scmp.eq.s32.totalorder %s28, 0
      %p465 = por %p463, %p464
      %p466 = scmp.ne.s32.totalorder %s458, %s460
      %p467 = scmp.eq.s32.totalorder %s33, 1
      %p468 = por %p466, %p467
      %p469 = scmp.ne.s32.totalorder %s460, %s461
      %p470 = scmp.eq.s32.totalorder %s33, 0
      %p471 = por %p469, %p470
      %p472 = scmp.ne.s32.totalorder %s460, %s461
      %p473 = scmp.eq.s32.totalorder %s34, 1
      %p474 = por %p472, %p473
      %p476 = scmp.ne.s32.totalorder %s461, %s475
      %p477 = scmp.eq.s32.totalorder %s34, 0
      %p478 = por %p476, %p477
      %s480 = sadd.s32 %s479, 1
      %p483 = scmp.eq.s32.totalorder %s28, 1
      %p484 = scmp.ne.s32.totalorder %s479, %s481
      %p485 = scmp.eq.s32.totalorder %s28, 0
      %p486 = por %p484, %p485
      %p487 = scmp.ne.s32.totalorder %s479, %s481
      %p488 = scmp.eq.s32.totalorder %s33, 1
      %p489 = por %p487, %p488
      %p490 = scmp.ne.s32.totalorder %s481, %s482
      %p491 = scmp.eq.s32.totalorder %s33, 0
      %p492 = por %p490, %p491
      %p493 = scmp.ne.s32.totalorder %s481, %s482
      %p494 = scmp.eq.s32.totalorder %s34, 1
      %p495 = por %p493, %p494
      %p497 = scmp.ne.s32.totalorder %s482, %s496
      %p498 = scmp.eq.s32.totalorder %s34, 0
      %p499 = por %p497, %p498
      %s501 = sadd.s32 %s500, 1
      %p504 = scmp.eq.s32.totalorder %s28, 1
      %p505 = scmp.ne.s32.totalorder %s500, %s502
      %p506 = scmp.eq.s32.totalorder %s28, 0
      %p507 = por %p505, %p506
      %p508 = scmp.ne.s32.totalorder %s500, %s502
      %p509 = scmp.eq.s32.totalorder %s33, 1
      %p510 = por %p508, %p509
      %p511 = scmp.ne.s32.totalorder %s502, %s503
      %p512 = scmp.eq.s32.totalorder %s33, 0
      %p513 = por %p511, %p512
      %p514 = scmp.ne.s32.totalorder %s502, %s503
      %p515 = scmp.eq.s32.totalorder %s34, 1
      %p516 = por %p514, %p515
      %p518 = scmp.ne.s32.totalorder %s503, %s517
      %p519 = scmp.eq.s32.totalorder %s34, 0
      %p520 = por %p518, %p519
      %p521 = scmp.le.s32.totalorder 1, %s28
      %p522 = scmp.lt.s32.totalorder %s28, 3
      %p523 = pnand %p521, %p522
      %p524 = pneg %p523
      // Predicated region
      $region9: #{tpu_custom_call.1} parent=5 // pred_check
        _
      $region10: #{tpu_custom_call.1} parent=5 // pred_check_branch
        %526 = sbr.rel (%p523) target = $region12
      $region11: #{tpu_custom_call.1} parent=5 // pred_region
        %s527 = ssub.s32 %s28, 1
        // Predicated region
        $region13: #{tpu_custom_call.1} parent=11 // pred_check
          %p528 = pneg %p49
        $region14: #{tpu_custom_call.1} parent=11 // pred_check_branch
          %530 = sbr.rel (%p528) target = $region16
        $region15: #{tpu_custom_call.1} parent=11 // pred_region
          %532 = vsyncadd [#allocation4], 0
          %s533 = sshll.u32 %s0, 4
          %s534 = int_to_ptr.hbm [resolvable:$true] %s533
          %s535 = sshll.u32 [#allocation3], 4
          %s536 = int_to_ptr.vmem [resolvable:$true] %s535
          %541 = dma.hbm_to_vmem [thread:$0]  %s534, 256, %s536, [#allocation4], 128, 128, 8
        $region16: #{tpu_custom_call.1} parent=11 // pred_fallthru
          _
        // Predicated region
        $region17: #{tpu_custom_call.1} parent=11 // pred_check
          %p542 = pneg %p70
        $region18: #{tpu_custom_call.1} parent=11 // pred_check_branch
          %544 = sbr.rel (%p542) target = $region20
        $region19: #{tpu_custom_call.1} parent=11 // pred_region
          %546 = vsyncadd [#allocation7], 0
          %s547 = sshll.u32 %s1, 4
          %s548 = int_to_ptr.hbm [resolvable:$true] %s547
          %s549 = sshll.u32 [#allocation6], 4
          %s550 = int_to_ptr.vmem [resolvable:$true] %s549
          %555 = dma.hbm_to_vmem [thread:$0]  %s548, 256, %s550, [#allocation7], 128, 128, 8
        $region20: #{tpu_custom_call.1} parent=11 // pred_fallthru
          _
        // Predicated region
        $region21: #{tpu_custom_call.1} parent=11 // pred_check
          %p556 = pneg %p429
        $region22: #{tpu_custom_call.1} parent=11 // pred_check_branch
          %558 = sbr.rel (%p556) target = $region24
        $region23: #{tpu_custom_call.1} parent=11 // pred_region
          _
        $region24: #{tpu_custom_call.1} parent=11 // pred_fallthru
          _
        // Predicated region
        $region25: #{tpu_custom_call.1} parent=11 // pred_check
          %p559 = pneg %p450
        $region26: #{tpu_custom_call.1} parent=11 // pred_check_branch
          %561 = sbr.rel (%p559) target = $region28
        $region27: #{tpu_custom_call.1} parent=11 // pred_region
          _
        $region28: #{tpu_custom_call.1} parent=11 // pred_fallthru
          _
        // Predicated region
        $region29: #{tpu_custom_call.1} parent=11 // pred_check
          %p562 = pneg %p471
        $region30: #{tpu_custom_call.1} parent=11 // pred_check_branch
          %564 = sbr.rel (%p562) target = $region32
        $region31: #{tpu_custom_call.1} parent=11 // pred_region
          %566 = vsyncadd [#allocation7], 0
          %s567 = sshll.u32 %s17, 4
          %s568 = int_to_ptr.hbm [resolvable:$true] %s567
          %s569 = sshll.u32 [#allocation9], 4
          %s570 = int_to_ptr.vmem [resolvable:$true] %s569
          %575 = dma.hbm_to_vmem [thread:$0]  %s568, 256, %s570, [#allocation7], 64, 64, 4
        $region32: #{tpu_custom_call.1} parent=11 // pred_fallthru
          _
        // Predicated region
        $region33: #{tpu_custom_call.1} parent=11 // pred_check
          %p576 = pneg %p492
        $region34: #{tpu_custom_call.1} parent=11 // pred_check_branch
          %578 = sbr.rel (%p576) target = $region36
        $region35: #{tpu_custom_call.1} parent=11 // pred_region
          _
        $region36: #{tpu_custom_call.1} parent=11 // pred_fallthru
          _
      $region12: #{tpu_custom_call.1} parent=5 // pred_fallthru
        _
      %p579 = scmp.lt.s32.totalorder %s28, 2
      // Predicated region
      $region37: #{tpu_custom_call.1} parent=5 // pred_check
        %p580 = pneg %p579
      $region38: #{tpu_custom_call.1} parent=5 // pred_check_branch
        %582 = sbr.rel (%p580) target = $region40
      $region39: #{tpu_custom_call.1} parent=5 // pred_region
        // Predicated region
        $region41: #{tpu_custom_call.1} parent=39 // pred_check
          %p583 = pneg %p90
        $region42: #{tpu_custom_call.1} parent=39 // pred_check_branch
          %585 = sbr.rel (%p583) target = $region44
        $region43: #{tpu_custom_call.1} parent=39 // pred_region
          %p586 = scmp.lt.s32.totalorder %s28, 1
          %s587 = scalar_select %p586, %s28, 1
          %s588 = smul.addr %s587, 4
          %s589 = smul.addr %s588, 4
          %s590 = scalar_lea.vmem %s2, %s589
        $region44: #{tpu_custom_call.1} parent=39 // pred_fallthru
          _
        // Predicated region
        $region45: #{tpu_custom_call.1} parent=39 // pred_check
          %p591 = pneg %p116
        $region46: #{tpu_custom_call.1} parent=39 // pred_check_branch
          %593 = sbr.rel (%p591) target = $region48
        $region47: #{tpu_custom_call.1} parent=39 // pred_region
          %p594 = scmp.lt.s32.totalorder %s28, 1
          %s595 = scalar_select %p594, %s28, 1
          %s596 = smul.addr %s595, 4
          %s597 = smul.addr %s596, 4
          %s598 = scalar_lea.vmem %s3, %s597
        $region48: #{tpu_custom_call.1} parent=39 // pred_fallthru
          _
        // Predicated region
        $region49: #{tpu_custom_call.1} parent=39 // pred_check
          %p599 = pneg %p142
        $region50: #{tpu_custom_call.1} parent=39 // pred_check_branch
          %601 = sbr.rel (%p599) target = $region52
        $region51: #{tpu_custom_call.1} parent=39 // pred_region
          %p602 = scmp.lt.s32.totalorder %s28, 1
          %s603 = scalar_select %p602, %s28, 1
          %s604 = smul.addr %s603, 4
          %s605 = smul.addr %s604, 4
          %s606 = scalar_lea.vmem %s4, %s605
        $region52: #{tpu_custom_call.1} parent=39 // pred_fallthru
          _
        // Predicated region
        $region53: #{tpu_custom_call.1} parent=39 // pred_check
          %p607 = pneg %p168
        $region54: #{tpu_custom_call.1} parent=39 // pred_check_branch
          %609 = sbr.rel (%p607) target = $region56
        $region55: #{tpu_custom_call.1} parent=39 // pred_region
          %p610 = scmp.lt.s32.totalorder %s28, 1
          %s611 = scalar_select %p610, %s28, 1
          %s612 = smul.addr %s611, 4
          %s613 = smul.addr %s612, 4
          %s614 = scalar_lea.vmem %s5, %s613
        $region56: #{tpu_custom_call.1} parent=39 // pred_fallthru
          _
        // Predicated region
        $region57: #{tpu_custom_call.1} parent=39 // pred_check
          %p615 = pneg %p194
        $region58: #{tpu_custom_call.1} parent=39 // pred_check_branch
          %617 = sbr.rel (%p615) target = $region60
        $region59: #{tpu_custom_call.1} parent=39 // pred_region
          %p618 = scmp.lt.s32.totalorder %s28, 1
          %s619 = scalar_select %p618, %s28, 1
          %s620 = scalar_lea.vmem %s6, %s619
        $region60: #{tpu_custom_call.1} parent=39 // pred_fallthru
          _
        // Predicated region
        $region61: #{tpu_custom_call.1} parent=39 // pred_check
          %p621 = pneg %p220
        $region62: #{tpu_custom_call.1} parent=39 // pred_check_branch
          %623 = sbr.rel (%p621) target = $region64
        $region63: #{tpu_custom_call.1} parent=39 // pred_region
          %p624 = scmp.lt.s32.totalorder %s28, 1
          %s625 = scalar_select %p624, %s28, 1
          %s626 = scalar_lea.vmem %s7, %s625
        $region64: #{tpu_custom_call.1} parent=39 // pred_fallthru
          _
        // Predicated region
        $region65: #{tpu_custom_call.1} parent=39 // pred_check
          %p627 = pneg %p246
        $region66: #{tpu_custom_call.1} parent=39 // pred_check_branch
          %629 = sbr.rel (%p627) target = $region68
        $region67: #{tpu_custom_call.1} parent=39 // pred_region
          %p630 = scmp.lt.s32.totalorder %s28, 1
          %s631 = scalar_select %p630, %s28, 1
          %s632 = scalar_lea.vmem %s8, %s631
        $region68: #{tpu_custom_call.1} parent=39 // pred_fallthru
          _
        // Predicated region
        $region69: #{tpu_custom_call.1} parent=39 // pred_check
          %p633 = pneg %p272
        $region70: #{tpu_custom_call.1} parent=39 // pred_check_branch
          %635 = sbr.rel (%p633) target = $region72
        $region71: #{tpu_custom_call.1} parent=39 // pred_region
          %s636 = sand.u32 %s28, 1
          %s637 = scalar_lea.sflag [#allocation4], %s636
          %s638 = sand.u32 %s262, 1
          %s639 = scalar_lea.vmem [#allocation8], %s638
          %641 = vsyncadd %s637, 0
          %s642 = scalar_lea.hbm %s9, %s28
          %s644 = sshll.u32 %s642, 4
          %s645 = int_to_ptr.hbm [resolvable:$true] %s644
          %s646 = sshll.u32 %s639, 4
          %s647 = int_to_ptr.vmem [resolvable:$true] %s646
          %649 = dma.hbm_to_vmem [thread:$0]  %s645, 16, %s647, %s637
        $region72: #{tpu_custom_call.1} parent=39 // pred_fallthru
          _
        // Predicated region
        $region73: #{tpu_custom_call.1} parent=39 // pred_check
          %p650 = pneg %p298
        $region74: #{tpu_custom_call.1} parent=39 // pred_check_branch
          %652 = sbr.rel (%p650) target = $region76
        $region75: #{tpu_custom_call.1} parent=39 // pred_region
          %p653 = scmp.lt.s32.totalorder %s28, 1
          %s654 = scalar_select %p653, %s28, 1
          %s655 = scalar_lea.vmem %s10, %s654
        $region76: #{tpu_custom_call.1} parent=39 // pred_fallthru
          _
        // Predicated region
        $region77: #{tpu_custom_call.1} parent=39 // pred_check
          %p656 = pneg %p324
        $region78: #{tpu_custom_call.1} parent=39 // pred_check_branch
          %658 = sbr.rel (%p656) target = $region80
        $region79: #{tpu_custom_call.1} parent=39 // pred_region
          %p659 = scmp.lt.s32.totalorder %s28, 1
          %s660 = scalar_select %p659, %s28, 1
          %s661 = smul.addr %s660, 4
          %s662 = smul.addr %s661, 4
          %s663 = scalar_lea.vmem %s11, %s662
        $region80: #{tpu_custom_call.1} parent=39 // pred_fallthru
          _
        // Predicated region
        $region81: #{tpu_custom_call.1} parent=39 // pred_check
          %p664 = pneg %p350
        $region82: #{tpu_custom_call.1} parent=39 // pred_check_branch
          %666 = sbr.rel (%p664) target = $region84
        $region83: #{tpu_custom_call.1} parent=39 // pred_region
          %p667 = scmp.lt.s32.totalorder %s28, 1
          %s668 = scalar_select %p667, %s28, 1
          %s669 = scalar_lea.vmem %s12, %s668
        $region84: #{tpu_custom_call.1} parent=39 // pred_fallthru
          _
        // Predicated region
        $region85: #{tpu_custom_call.1} parent=39 // pred_check
          %p670 = pneg %p376
        $region86: #{tpu_custom_call.1} parent=39 // pred_check_branch
          %672 = sbr.rel (%p670) target = $region88
        $region87: #{tpu_custom_call.1} parent=39 // pred_region
          %p673 = scmp.lt.s32.totalorder %s28, 1
          %s674 = scalar_select %p673, %s28, 1
          %s675 = smul.addr %s674, 16
          %s676 = smul.addr %s675, 4
          %s677 = scalar_lea.vmem %s13, %s676
        $region88: #{tpu_custom_call.1} parent=39 // pred_fallthru
          _
        // Predicated region
        $region89: #{tpu_custom_call.1} parent=39 // pred_check
          %p678 = pneg %p402
        $region90: #{tpu_custom_call.1} parent=39 // pred_check_branch
          %680 = sbr.rel (%p678) target = $region92
        $region91: #{tpu_custom_call.1} parent=39 // pred_region
          %p681 = scmp.lt.s32.totalorder %s28, 1
          %s682 = scalar_select %p681, %s28, 1
          %s683 = scalar_lea.vmem %s14, %s682
        $region92: #{tpu_custom_call.1} parent=39 // pred_fallthru
          _
      $region40: #{tpu_custom_call.1} parent=5 // pred_fallthru
        _
      %p684 = scmp.le.s32.totalorder 1, %s28
      %p685 = scmp.lt.s32.totalorder %s28, 3
      %p686 = pnand %p684, %p685
      %p687 = pneg %p686
      // Predicated region
      $region93: #{tpu_custom_call.1} parent=5 // pred_check
        _
      $region94: #{tpu_custom_call.1} parent=5 // pred_check_branch
        %689 = sbr.rel (%p686) target = $region96
      $region95: #{tpu_custom_call.1} parent=5 // pred_region
        %s690 = ssub.s32 %s28, 1
        // Predicated region
        $region97: #{tpu_custom_call.1} parent=95 // pred_check
          %p691 = pneg %p49
        $region98: #{tpu_custom_call.1} parent=95 // pred_check_branch
          %693 = sbr.rel (%p691) target = $region100
        $region99: #{tpu_custom_call.1} parent=95 // pred_region
          %695 = dma.done [#allocation4], 256
        $region100: #{tpu_custom_call.1} parent=95 // pred_fallthru
          _
        // Predicated region
        $region101: #{tpu_custom_call.1} parent=95 // pred_check
          %p696 = pneg %p70
        $region102: #{tpu_custom_call.1} parent=95 // pred_check_branch
          %698 = sbr.rel (%p696) target = $region104
        $region103: #{tpu_custom_call.1} parent=95 // pred_region
          %700 = dma.done [#allocation7], 256
        $region104: #{tpu_custom_call.1} parent=95 // pred_fallthru
          _
        %s701 = sand.u32 %s33, 1
        %s702 = scalar_lea.sflag [#allocation4], %s701
        %s703 = sand.u32 %s265, 1
        %s704 = scalar_lea.vmem [#allocation8], %s703
        // Predicated region
        $region105: #{tpu_custom_call.1} parent=95 // pred_check
          %p705 = pneg %p278
        $region106: #{tpu_custom_call.1} parent=95 // pred_check_branch
          %707 = sbr.rel (%p705) target = $region108
        $region107: #{tpu_custom_call.1} parent=95 // pred_region
          %709 = dma.done %s702, 16
        $region108: #{tpu_custom_call.1} parent=95 // pred_fallthru
          _
        // Predicated region
        $region109: #{tpu_custom_call.1} parent=95 // pred_check
          %p710 = pneg %p471
        $region110: #{tpu_custom_call.1} parent=95 // pred_check_branch
          %712 = sbr.rel (%p710) target = $region112
        $region111: #{tpu_custom_call.1} parent=95 // pred_region
          %714 = dma.done [#allocation7], 256
        $region112: #{tpu_custom_call.1} parent=95 // pred_fallthru
          _
        %p715 = pneg %p49
        %p716 = pneg %p46
        %p717 = pneg %p70
        %p718 = pneg %p67
        %p719 = scmp.lt.s32.totalorder %s33, 1
        %s720 = scalar_select %p719, %s33, 1
        %s721 = smul.addr %s720, 4
        %s722 = smul.addr %s721, 4
        %s723 = scalar_lea.vmem %s2, %s722
        %p724 = pneg %p96
        %p725 = pneg %p93
        %p726 = scmp.lt.s32.totalorder %s33, 1
        %s727 = scalar_select %p726, %s33, 1
        %s728 = smul.addr %s727, 4
        %s729 = smul.addr %s728, 4
        %s730 = scalar_lea.vmem %s3, %s729
        %p731 = pneg %p122
        %p732 = pneg %p119
        %p733 = scmp.lt.s32.totalorder %s33, 1
        %s734 = scalar_select %p733, %s33, 1
        %s735 = smul.addr %s734, 4
        %s736 = smul.addr %s735, 4
        %s737 = scalar_lea.vmem %s4, %s736
        %p738 = pneg %p148
        %p739 = pneg %p145
        %p740 = scmp.lt.s32.totalorder %s33, 1
        %s741 = scalar_select %p740, %s33, 1
        %s742 = smul.addr %s741, 4
        %s743 = smul.addr %s742, 4
        %s744 = scalar_lea.vmem %s5, %s743
        %p745 = pneg %p174
        %p746 = pneg %p171
        %p747 = scmp.lt.s32.totalorder %s33, 1
        %s748 = scalar_select %p747, %s33, 1
        %s749 = scalar_lea.vmem %s6, %s748
        %p750 = pneg %p200
        %p751 = pneg %p197
        %p752 = scmp.lt.s32.totalorder %s33, 1
        %s753 = scalar_select %p752, %s33, 1
        %s754 = scalar_lea.vmem %s7, %s753
        %p755 = pneg %p226
        %p756 = pneg %p223
        %p757 = scmp.lt.s32.totalorder %s33, 1
        %s758 = scalar_select %p757, %s33, 1
        %s759 = scalar_lea.vmem %s8, %s758
        %p760 = pneg %p252
        %p761 = pneg %p249
        %s762 = sand.u32 %s33, 1
        %s763 = scalar_lea.sflag [#allocation4], %s762
        %s764 = sand.u32 %s265, 1
        %s765 = scalar_lea.vmem [#allocation8], %s764
        %p766 = pneg %p278
        %p767 = pneg %p275
        %p768 = scmp.lt.s32.totalorder %s33, 1
        %s769 = scalar_select %p768, %s33, 1
        %s770 = scalar_lea.vmem %s10, %s769
        %p771 = pneg %p304
        %p772 = pneg %p301
        %p773 = scmp.lt.s32.totalorder %s33, 1
        %s774 = scalar_select %p773, %s33, 1
        %s775 = smul.addr %s774, 4
        %s776 = smul.addr %s775, 4
        %s777 = scalar_lea.vmem %s11, %s776
        %p778 = pneg %p330
        %p779 = pneg %p327
        %p780 = scmp.lt.s32.totalorder %s33, 1
        %s781 = scalar_select %p780, %s33, 1
        %s782 = scalar_lea.vmem %s12, %s781
        %p783 = pneg %p356
        %p784 = pneg %p353
        %p785 = scmp.lt.s32.totalorder %s33, 1
        %s786 = scalar_select %p785, %s33, 1
        %s787 = smul.addr %s786, 16
        %s788 = smul.addr %s787, 4
        %s789 = scalar_lea.vmem %s13, %s788
        %p790 = pneg %p382
        %p791 = pneg %p379
        %p792 = scmp.lt.s32.totalorder %s33, 1
        %s793 = scalar_select %p792, %s33, 1
        %s794 = scalar_lea.vmem %s14, %s793
        %p795 = pneg %p408
        %p796 = pneg %p405
        %p797 = pneg %p429
        %p798 = pneg %p426
        %p799 = pneg %p450
        %p800 = pneg %p447
        %p801 = pneg %p471
        %p802 = pneg %p468
        %p803 = pneg %p492
        %p804 = pneg %p489
        %p805 = pneg %p513
        %p806 = pneg %p510
        %p807 = scmp.lt.s32.totalorder %s33, 1
        %s808 = scalar_select %p807, %s33, 1
        %s809 = smul.addr %s808, 4
        %s810 = smul.addr %s809, 4
        %s811 = scalar_lea.vmem %s2, %s810
        %p812 = scmp.lt.s32.totalorder %s33, 1
        %s813 = scalar_select %p812, %s33, 1
        %s814 = smul.addr %s813, 4
        %s815 = smul.addr %s814, 4
        %s816 = scalar_lea.vmem %s3, %s815
        %p817 = scmp.lt.s32.totalorder %s33, 1
        %s818 = scalar_select %p817, %s33, 1
        %s819 = smul.addr %s818, 4
        %s820 = smul.addr %s819, 4
        %s821 = scalar_lea.vmem %s4, %s820
        %p822 = scmp.lt.s32.totalorder %s33, 1
        %s823 = scalar_select %p822, %s33, 1
        %s824 = smul.addr %s823, 4
        %s825 = smul.addr %s824, 4
        %s826 = scalar_lea.vmem %s5, %s825
        %p827 = scmp.lt.s32.totalorder %s33, 1
        %s828 = scalar_select %p827, %s33, 1
        %s829 = scalar_lea.vmem %s6, %s828
        %p830 = scmp.lt.s32.totalorder %s33, 1
        %s831 = scalar_select %p830, %s33, 1
        %s832 = scalar_lea.vmem %s7, %s831
        %p833 = scmp.lt.s32.totalorder %s33, 1
        %s834 = scalar_select %p833, %s33, 1
        %s835 = scalar_lea.vmem %s8, %s834
        %p836 = scmp.lt.s32.totalorder %s33, 1
        %s837 = scalar_select %p836, %s33, 1
        %s838 = scalar_lea.vmem %s10, %s837
        %p839 = scmp.lt.s32.totalorder %s33, 1
        %s840 = scalar_select %p839, %s33, 1
        %s841 = smul.addr %s840, 4
        %s842 = smul.addr %s841, 4
        %s843 = scalar_lea.vmem %s11, %s842
        %p844 = scmp.lt.s32.totalorder %s33, 1
        %s845 = scalar_select %p844, %s33, 1
        %s846 = scalar_lea.vmem %s12, %s845
        %p847 = scmp.lt.s32.totalorder %s33, 1
        %s848 = scalar_select %p847, %s33, 1
        %s849 = smul.addr %s848, 16
        %s850 = smul.addr %s849, 4
        %s851 = scalar_lea.vmem %s13, %s850
        %p852 = scmp.lt.s32.totalorder %s33, 1
        %s853 = scalar_select %p852, %s33, 1
        %s854 = scalar_lea.vmem %s14, %s853
        %p856 = scmp.eq.s32.totalorder %s33, 0
        // Predicated region
        $region113: #{tpu_custom_call.1} parent=95 // pred_check
          %p857 = pneg %p856
        $region114: #{tpu_custom_call.1} parent=95 // pred_check_branch
          %859 = sbr.rel (%p857) target = $region116
        $region115: #{tpu_custom_call.1} parent=95 // pred_region
          %v860 = vld [vmem:[#allocation3] sm:$0xff]
          %v861 = vld [vmem:[#allocation3 + $0x8] sm:$0xff]
          %vm862 = vcmask 261120
          %863 = vst.msk [vmem:[#allocation2] sm:$0xff] %vm862, %v860
          %864 = vst.msk [vmem:[#allocation2 + $0x8] sm:$0xff] %vm862, %v861
        $region116: #{tpu_custom_call.1} parent=95 // pred_fallthru
          _
        %v865 = vld [vmem:[#allocation2] sm:$0xff]
        %v866 = vld [vmem:[#allocation2 + $0x8] sm:$0xff]
        %v867 = vld [vmem:[#allocation6] sm:$0xff]
        %v868 = vld [vmem:[#allocation6 + $0x8] sm:$0xff]
        %v869 = vld [vmem:[%s832] sm:$0x1]
        %v870 = vld [vmem:[%s835] sm:$0x1]
        %vm871 = vcmask 261120
        %v872 = vsel %vm871, %v865, 0.0
        %873 = vadd.xlane.f32.xlu0 %v872
        %v874 = vpop.xlane.xlu0 %873
        %v875 = vsel %vm871, %v866, 0.0
        %876 = vadd.xlane.f32.xlu0 %v875
        %v877 = vpop.xlane.xlu0 %876
        %v878 = vrcp.pop 32.0
        %v879 = vmul.f32 32.0, %v878
        %v880 = vsub.f32 1.0, %v879
        %v881 = vmul.f32 %v878, %v880
        %v882 = vadd.f32 %v878, %v881
        %vm883 = vweird.f32 %v878
        %v884 = vsel %vm883, %v878, %v882
        %v885 = vmul.f32 %v874, %v884
        %v886 = vmul.f32 %v877, %v884
        %v887 = vsub.f32 %v865, %v885
        %v888 = vsub.f32 %v866, %v886
        %v889 = vmul.f32 %v887, %v887
        %v890 = vmul.f32 %v888, %v888
        %v891 = vsel %vm871, %v889, 0.0
        %892 = vadd.xlane.f32.xlu0 %v891
        %v893 = vpop.xlane.xlu0 %892
        %v894 = vsel %vm871, %v890, 0.0
        %895 = vadd.xlane.f32.xlu0 %v894
        %v896 = vpop.xlane.xlu0 %895
        %v897 = vrcp.pop 31.0
        %v898 = vmul.f32 31.0, %v897
        %v899 = vsub.f32 1.0, %v898
        %v900 = vmul.f32 %v897, %v899
        %v901 = vadd.f32 %v897, %v900
        %vm902 = vweird.f32 %v897
        %v903 = vsel %vm902, %v897, %v901
        %v904 = vmul.f32 %v893, %v903
        %v905 = vmul.f32 %v896, %v903
        %v906 = vrsqrt.pop %v904
        %v907 = vmul.f32 %v906, %v904
        %v908 = vmul.f32 %v907, %v906
        %v909 = vmul.f32 0.5, %v908
        %v910 = vsub.f32 1.5, %v909
        %v911 = vmul.f32 %v906, %v910
        %v912 = vmul.f32 %v904, %v911
        %vm913 = vcmp.eq.f32.partialorder %v904, inf
        %v914 = vsel %vm913, %v904, %v912
        %vm915 = vcmp.eq.f32.partialorder %v904, 0.0
        %v916 = vand.u32 %v904, 2147483648
        %v917 = vsel %vm915, %v916, %v914
        %v918 = vrsqrt.pop %v905
        %v919 = vmul.f32 %v918, %v905
        %v920 = vmul.f32 %v919, %v918
        %v921 = vmul.f32 0.5, %v920
        %v922 = vsub.f32 1.5, %v921
        %v923 = vmul.f32 %v918, %v922
        %v924 = vmul.f32 %v905, %v923
        %vm925 = vcmp.eq.f32.partialorder %v905, inf
        %v926 = vsel %vm925, %v905, %v924
        %vm927 = vcmp.eq.f32.partialorder %v905, 0.0
        %v928 = vand.u32 %v905, 2147483648
        %v929 = vsel %vm927, %v928, %v926
        %v930 = vadd.f32 %v917, 1e-06
        %v931 = vadd.f32 %v929, 1e-06
        %v932 = vrcp.pop %v930
        %v933 = vmul.f32 %v930, %v932
        %v934 = vsub.f32 1.0, %v933
        %v935 = vmul.f32 %v932, %v934
        %v936 = vadd.f32 %v932, %v935
        %vm937 = vweird.f32 %v930
        %vm938 = vweird.f32 %v932
        %vm939 = vmor %vm937, %vm938
        %v940 = vsel %vm939, %v932, %v936
        %v941 = vand.u32 2147483647, %v930
        %vm942 = vcmp.eq.f32.partialorder %v941, 8.507059e+37
        %v943 = vand.u32 %v930, 2147483648
        %v944 = vor.u32 1.1754944e-38, %v943
        %v945 = vsel %vm942, %v944, %v940
        %v946 = vmul.f32 %v887, %v945
        %v947 = vrcp.pop %v931
        %v948 = vmul.f32 %v931, %v947
        %v949 = vsub.f32 1.0, %v948
        %v950 = vmul.f32 %v947, %v949
        %v951 = vadd.f32 %v947, %v950
        %vm952 = vweird.f32 %v931
        %vm953 = vweird.f32 %v947
        %vm954 = vmor %vm952, %vm953
        %v955 = vsel %vm954, %v947, %v951
        %v956 = vand.u32 2147483647, %v931
        %vm957 = vcmp.eq.f32.partialorder %v956, 8.507059e+37
        %v958 = vand.u32 %v931, 2147483648
        %v959 = vor.u32 1.1754944e-38, %v958
        %v960 = vsel %vm957, %v959, %v955
        %v961 = vmul.f32 %v888, %v960
        %v963 = vperm.slane %v869, 0
        %v965 = vmul.f32 %v963, %v946
        %v966 = vmul.f32 %v963, %v961
        %v968 = vperm.slane %v870, 0
        %v970 = vadd.f32 %v965, %v968
        %v971 = vadd.f32 %v966, %v968
        %v972 = vpack.c.bf16 %v971, %v970
        %v973 = vld [vmem:[%s811] sm:$0xf]
        %v974 = vld [vmem:[%s811 + $0x4] sm:$0xf]
        %v975 = vld [vmem:[%s811 + $0x8] sm:$0xf]
        %v976 = vld [vmem:[%s811 + $0xc] sm:$0xf]
        %v981 = vunpack.c.l.b16 %v973
        %v982 = vunpack.c.l.b16 %v974
        %v983 = vunpack.c.l.b16 %v975
        %v984 = vunpack.c.l.b16 %v976
        %v985 = vpack.c.b16 %v982, %v981
        %v986 = vpack.c.b16 %v984, %v983
        %v990 = vsel %vm871, %v972, 0
        %992 = vmatpush.bf16.msra.mxu0 0
        %993 = vmatpush.bf16.msra.mxu0 0
        %994 = vmatpush.bf16.msra.mxu0 0
        %995 = vmatpush.bf16.msra.mxu0 0
        %996 = vmatpush.bf16.msra.mxu0 0
        %997 = vmatpush.bf16.msra.mxu0 0
        %998 = vmatpush.bf16.msra.mxu0 %v986
        %999 = vmatpush.bf16.msra.mxu0 %v985
        %1000 = vmatmul.bf16.gmra.mxu0 %v990
        %v1001 = vpop.f32.mrf.mxu0
        %v1002 = vadd.f32 0.0, %v1001
        %v1003 = vpop.f32.mrf.mxu0
        %v1004 = vadd.f32 0.0, %v1003
        %1005 = vdwg.mxu0
        %v1006 = vld [vmem:[%s816] sm:$0xf]
        %v1007 = vld [vmem:[%s816 + $0x4] sm:$0xf]
        %v1008 = vld [vmem:[%s816 + $0x8] sm:$0xf]
        %v1009 = vld [vmem:[%s816 + $0xc] sm:$0xf]
        %v1014 = vunpack.c.l.b16 %v1006
        %v1015 = vunpack.c.l.b16 %v1007
        %v1016 = vunpack.c.l.b16 %v1008
        %v1017 = vunpack.c.l.b16 %v1009
        %v1018 = vpack.c.b16 %v1015, %v1014
        %v1019 = vpack.c.b16 %v1017, %v1016
        %1022 = vmatpush.bf16.msra.mxu0 0
        %1023 = vmatpush.bf16.msra.mxu0 0
        %1024 = vmatpush.bf16.msra.mxu0 0
        %1025 = vmatpush.bf16.msra.mxu0 0
        %1026 = vmatpush.bf16.msra.mxu0 0
        %1027 = vmatpush.bf16.msra.mxu0 0
        %1028 = vmatpush.bf16.msra.mxu0 %v1019
        %1029 = vmatpush.bf16.msra.mxu0 %v1018
        %1030 = vmatmul.bf16.gmra.mxu0 %v990
        %v1031 = vpop.f32.mrf.mxu0
        %v1032 = vadd.f32 0.0, %v1031
        %v1033 = vpop.f32.mrf.mxu0
        %v1034 = vadd.f32 0.0, %v1033
        %1035 = vdwg.mxu0
        %v1036 = vld [vmem:[%s821] sm:$0xf]
        %v1037 = vld [vmem:[%s821 + $0x4] sm:$0xf]
        %v1038 = vld [vmem:[%s821 + $0x8] sm:$0xf]
        %v1039 = vld [vmem:[%s821 + $0xc] sm:$0xf]
        %v1044 = vunpack.c.l.b16 %v1036
        %v1045 = vunpack.c.l.b16 %v1037
        %v1046 = vunpack.c.l.b16 %v1038
        %v1047 = vunpack.c.l.b16 %v1039
        %v1048 = vpack.c.b16 %v1045, %v1044
        %v1049 = vpack.c.b16 %v1047, %v1046
        %1052 = vmatpush.bf16.msra.mxu0 0
        %1053 = vmatpush.bf16.msra.mxu0 0
        %1054 = vmatpush.bf16.msra.mxu0 0
        %1055 = vmatpush.bf16.msra.mxu0 0
        %1056 = vmatpush.bf16.msra.mxu0 0
        %1057 = vmatpush.bf16.msra.mxu0 0
        %1058 = vmatpush.bf16.msra.mxu0 %v1049
        %1059 = vmatpush.bf16.msra.mxu0 %v1048
        %1060 = vmatmul.bf16.gmra.mxu0 %v990
        %v1061 = vpop.f32.mrf.mxu0
        %v1062 = vadd.f32 0.0, %v1061
        %v1063 = vpop.f32.mrf.mxu0
        %v1064 = vadd.f32 0.0, %v1063
        %1065 = vdwg.mxu0
        %v1066 = vpack.c.bf16 %v1004, %v1002
        %1067 = vxpose.xlu0.b32.start [1/16] %v1032, 128
        %1068 = vxpose.xlu0.b32.cont [2/16] %v1034, 128
        %1069 = vxpose.xlu0.b32.cont [3/16] 0.0, 128
        %1070 = vxpose.xlu0.b32.cont [4/16] 0.0, 128
        %1071 = vxpose.xlu0.b32.cont [5/16] 0.0, 128
        %1072 = vxpose.xlu0.b32.cont [6/16] 0.0, 128
        %1073 = vxpose.xlu0.b32.cont [7/16] 0.0, 128
        %1074 = vxpose.xlu0.b32.cont [8/16] 0.0, 128
        %1075 = vxpose.xlu0.b32.cont [9/16] 0.0, 128
        %1076 = vxpose.xlu0.b32.cont [10/16] 0.0, 128
        %1077 = vxpose.xlu0.b32.cont [11/16] 0.0, 128
        %1078 = vxpose.xlu0.b32.cont [12/16] 0.0, 128
        %1079 = vxpose.xlu0.b32.cont [13/16] 0.0, 128
        %1080 = vxpose.xlu0.b32.cont [14/16] 0.0, 128
        %1081 = vxpose.xlu0.b32.cont [15/16] 0.0, 128
        %1082 = vxpose.xlu0.b32.end [16/16] 0.0, 128
        %v1083 = vpop.trf.xlu0
        %v1084 = vpop.trf.xlu0
        %v1085 = vpop.trf.xlu0
        %v1086 = vpop.trf.xlu0
        %v1087 = vpop.trf.xlu0
        %v1088 = vpop.trf.xlu0
        %v1089 = vpop.trf.xlu0
        %v1090 = vpop.trf.xlu0
        %v1091 = vpop.trf.xlu0
        %v1092 = vpop.trf.xlu0
        %v1093 = vpop.trf.xlu0
        %v1094 = vpop.trf.xlu0
        %v1095 = vpop.trf.xlu0
        %v1096 = vpop.trf.xlu0
        %v1097 = vpop.trf.xlu0
        %v1098 = vpop.trf.xlu0
        %v1099 = vpack.c.bf16 %v1083, %v1083
        %vm1100 = vcmask 64512
        %v1102 = vsel %vm1100, %v1066, 0
        %vm1104 = vcmask 1043456
        %v1106 = vsel %vm1104, %v1099, 0
        %1108 = vmatpush.bf16.msra.mxu0 0
        %1109 = vmatpush.bf16.msra.mxu0 0
        %1110 = vmatpush.bf16.msra.mxu0 0
        %1111 = vmatpush.bf16.msra.mxu0 0
        %1112 = vmatpush.bf16.msra.mxu0 0
        %1113 = vmatpush.bf16.msra.mxu0 0
        %1114 = vmatpush.bf16.msra.mxu0 0
        %1115 = vmatpush.bf16.msra.mxu0 %v1106
        %1116 = vmatmul.bf16.gmra.mxu0 %v1102
        %v1117 = vpop.f32.mrf.mxu0
        %v1118 = vadd.f32 0.0, %v1117
        %v1119 = vpop.f32.mrf.mxu0
        %v1120 = vadd.f32 0.0, %v1119
        %1121 = vdwg.mxu0
        %v1122 = vmul.f32 %v1118, 0.35355338
        %v1123 = vmul.f32 %v1120, 0.35355338
        %v1124 = vadd.f32 %v1122, %v867
        %v1125 = vadd.f32 %v1123, %v868
        %vm1126 = vcmask 130048
        %v1127 = vsel %vm1126, %v1124, -inf
        %1128 = vmax.xlane.f32.xlu0 %v1127
        %v1129 = vpop.xlane.xlu0 %1128
        %v1130 = vsel %vm1126, %v1125, -inf
        %1131 = vmax.xlane.f32.xlu0 %v1130
        %v1132 = vpop.xlane.xlu0 %1131
        %v1133 = vsub.f32 %v1124, %v1129
        %v1134 = vsub.f32 %v1125, %v1132
        %v1135 = vmul.f32 %v1133, 1.442695
        %v1136 = vpow.pop %v1135
        %v1137 = vmul.f32 %v1134, 1.442695
        %v1138 = vpow.pop %v1137
        %v1139 = vsel %vm1126, %v1136, 0.0
        %1140 = vadd.xlane.f32.xlu0 %v1139
        %v1141 = vpop.xlane.xlu0 %1140
        %v1142 = vsel %vm1126, %v1138, 0.0
        %1143 = vadd.xlane.f32.xlu0 %v1142
        %v1144 = vpop.xlane.xlu0 %1143
        %v1145 = vrcp.pop %v1141
        %v1146 = vrcp.pop %v1144
        %v1147 = vmul.f32 %v1136, %v1145
        %v1148 = vmul.f32 %v1138, %v1146
        %v1149 = vpack.c.bf16 %v1148, %v1147
        %v1150 = vpack.c.bf16 %v1064, %v1062
        %v1152 = vsel %vm1126, %v1149, 0
        %1154 = vmatpush.bf16.msra.mxu0 0
        %1155 = vmatpush.bf16.msra.mxu0 0
        %1156 = vmatpush.bf16.msra.mxu0 0
        %1157 = vmatpush.bf16.msra.mxu0 0
        %1158 = vmatpush.bf16.msra.mxu0 0
        %1159 = vmatpush.bf16.msra.mxu0 0
        %1160 = vmatpush.bf16.msra.mxu0 0
        %1161 = vmatpush.bf16.msra.mxu0 %v1150
        %1162 = vmatmul.bf16.gmra.mxu0 %v1152
        %v1163 = vpop.f32.mrf.mxu0
        %v1164 = vadd.f32 0.0, %v1163
        %v1165 = vpop.f32.mrf.mxu0
        %v1166 = vadd.f32 0.0, %v1165
        %1167 = vdwg.mxu0
        %1170 = vrot.lane.b32.xlu0 %v1032, 120
        %v1171 = vpop.permute.xlu0 %1170
        %1172 = vrot.lane.b32.xlu0 %v1034, 120
        %v1173 = vpop.permute.xlu0 %1172
        %1176 = vxpose.xlu0.b32.start [1/16] %v1171, 128
        %1177 = vxpose.xlu0.b32.cont [2/16] %v1173, 128
        %1178 = vxpose.xlu0.b32.cont [3/16] 0.0, 128
        %1179 = vxpose.xlu0.b32.cont [4/16] 0.0, 128
        %1180 = vxpose.xlu0.b32.cont [5/16] 0.0, 128
        %1181 = vxpose.xlu0.b32.cont [6/16] 0.0, 128
        %1182 = vxpose.xlu0.b32.cont [7/16] 0.0, 128
        %1183 = vxpose.xlu0.b32.cont [8/16] 0.0, 128
        %1184 = vxpose.xlu0.b32.cont [9/16] 0.0, 128
        %1185 = vxpose.xlu0.b32.cont [10/16] 0.0, 128
        %1186 = vxpose.xlu0.b32.cont [11/16] 0.0, 128
        %1187 = vxpose.xlu0.b32.cont [12/16] 0.0, 128
        %1188 = vxpose.xlu0.b32.cont [13/16] 0.0, 128
        %1189 = vxpose.xlu0.b32.cont [14/16] 0.0, 128
        %1190 = vxpose.xlu0.b32.cont [15/16] 0.0, 128
        %1191 = vxpose.xlu0.b32.end [16/16] 0.0, 128
        %v1192 = vpop.trf.xlu0
        %v1193 = vpop.trf.xlu0
        %v1194 = vpop.trf.xlu0
        %v1195 = vpop.trf.xlu0
        %v1196 = vpop.trf.xlu0
        %v1197 = vpop.trf.xlu0
        %v1198 = vpop.trf.xlu0
        %v1199 = vpop.trf.xlu0
        %v1200 = vpop.trf.xlu0
        %v1201 = vpop.trf.xlu0
        %v1202 = vpop.trf.xlu0
        %v1203 = vpop.trf.xlu0
        %v1204 = vpop.trf.xlu0
        %v1205 = vpop.trf.xlu0
        %v1206 = vpop.trf.xlu0
        %v1207 = vpop.trf.xlu0
        %v1208 = vpack.c.bf16 %v1192, %v1192
        %1210 = vrot.lane.b32.xlu0 %v1066, 120
        %v1211 = vpop.permute.xlu0 %1210
        %v1213 = vsel %vm1100, %v1211, 0
        %v1216 = vsel %vm1104, %v1208, 0
        %1218 = vmatpush.bf16.msra.mxu0 0
        %1219 = vmatpush.bf16.msra.mxu0 0
        %1220 = vmatpush.bf16.msra.mxu0 0
        %1221 = vmatpush.bf16.msra.mxu0 0
        %1222 = vmatpush.bf16.msra.mxu0 0
        %1223 = vmatpush.bf16.msra.mxu0 0
        %1224 = vmatpush.bf16.msra.mxu0 0
        %1225 = vmatpush.bf16.msra.mxu0 %v1216
        %1226 = vmatmul.bf16.gmra.mxu0 %v1213
        %v1227 = vpop.f32.mrf.mxu0
        %v1228 = vadd.f32 0.0, %v1227
        %v1229 = vpop.f32.mrf.mxu0
        %v1230 = vadd.f32 0.0, %v1229
        %1231 = vdwg.mxu0
        %v1232 = vmul.f32 %v1228, 0.35355338
        %v1233 = vmul.f32 %v1230, 0.35355338
        %v1234 = vadd.f32 %v1232, %v867
        %v1235 = vadd.f32 %v1233, %v868
        %v1236 = vsel %vm1126, %v1234, -inf
        %1237 = vmax.xlane.f32.xlu0 %v1236
        %v1238 = vpop.xlane.xlu0 %1237
        %v1239 = vsel %vm1126, %v1235, -inf
        %1240 = vmax.xlane.f32.xlu0 %v1239
        %v1241 = vpop.xlane.xlu0 %1240
        %v1242 = vsub.f32 %v1234, %v1238
        %v1243 = vsub.f32 %v1235, %v1241
        %v1244 = vmul.f32 %v1242, 1.442695
        %v1245 = vpow.pop %v1244
        %v1246 = vmul.f32 %v1243, 1.442695
        %v1247 = vpow.pop %v1246
        %v1248 = vsel %vm1126, %v1245, 0.0
        %1249 = vadd.xlane.f32.xlu0 %v1248
        %v1250 = vpop.xlane.xlu0 %1249
        %v1251 = vsel %vm1126, %v1247, 0.0
        %1252 = vadd.xlane.f32.xlu0 %v1251
        %v1253 = vpop.xlane.xlu0 %1252
        %v1254 = vrcp.pop %v1250
        %v1255 = vrcp.pop %v1253
        %v1256 = vmul.f32 %v1245, %v1254
        %v1257 = vmul.f32 %v1247, %v1255
        %v1258 = vpack.c.bf16 %v1257, %v1256
        %1260 = vrot.lane.b32.xlu0 %v1150, 120
        %v1261 = vpop.permute.xlu0 %1260
        %v1264 = vsel %vm1126, %v1258, 0
        %1266 = vmatpush.bf16.msra.mxu0 0
        %1267 = vmatpush.bf16.msra.mxu0 0
        %1268 = vmatpush.bf16.msra.mxu0 0
        %1269 = vmatpush.bf16.msra.mxu0 0
        %1270 = vmatpush.bf16.msra.mxu0 0
        %1271 = vmatpush.bf16.msra.mxu0 0
        %1272 = vmatpush.bf16.msra.mxu0 0
        %1273 = vmatpush.bf16.msra.mxu0 %v1261
        %1274 = vmatmul.bf16.gmra.mxu0 %v1264
        %v1275 = vpop.f32.mrf.mxu0
        %v1276 = vadd.f32 0.0, %v1275
        %v1277 = vpop.f32.mrf.mxu0
        %v1278 = vadd.f32 0.0, %v1277
        %1279 = vdwg.mxu0
        %1280 = vrot.lane.b32.xlu0 %v1032, 112
        %v1281 = vpop.permute.xlu0 %1280
        %1282 = vrot.lane.b32.xlu0 %v1034, 112
        %v1283 = vpop.permute.xlu0 %1282
        %1286 = vxpose.xlu0.b32.start [1/16] %v1281, 128
        %1287 = vxpose.xlu0.b32.cont [2/16] %v1283, 128
        %1288 = vxpose.xlu0.b32.cont [3/16] 0.0, 128
        %1289 = vxpose.xlu0.b32.cont [4/16] 0.0, 128
        %1290 = vxpose.xlu0.b32.cont [5/16] 0.0, 128
        %1291 = vxpose.xlu0.b32.cont [6/16] 0.0, 128
        %1292 = vxpose.xlu0.b32.cont [7/16] 0.0, 128
        %1293 = vxpose.xlu0.b32.cont [8/16] 0.0, 128
        %1294 = vxpose.xlu0.b32.cont [9/16] 0.0, 128
        %1295 = vxpose.xlu0.b32.cont [10/16] 0.0, 128
        %1296 = vxpose.xlu0.b32.cont [11/16] 0.0, 128
        %1297 = vxpose.xlu0.b32.cont [12/16] 0.0, 128
        %1298 = vxpose.xlu0.b32.cont [13/16] 0.0, 128
        %1299 = vxpose.xlu0.b32.cont [14/16] 0.0, 128
        %1300 = vxpose.xlu0.b32.cont [15/16] 0.0, 128
        %1301 = vxpose.xlu0.b32.end [16/16] 0.0, 128
        %v1302 = vpop.trf.xlu0
        %v1303 = vpop.trf.xlu0
        %v1304 = vpop.trf.xlu0
        %v1305 = vpop.trf.xlu0
        %v1306 = vpop.trf.xlu0
        %v1307 = vpop.trf.xlu0
        %v1308 = vpop.trf.xlu0
        %v1309 = vpop.trf.xlu0
        %v1310 = vpop.trf.xlu0
        %v1311 = vpop.trf.xlu0
        %v1312 = vpop.trf.xlu0
        %v1313 = vpop.trf.xlu0
        %v1314 = vpop.trf.xlu0
        %v1315 = vpop.trf.xlu0
        %v1316 = vpop.trf.xlu0
        %v1317 = vpop.trf.xlu0
        %v1318 = vpack.c.bf16 %v1302, %v1302
        %1319 = vrot.lane.b32.xlu0 %v1066, 112
        %v1320 = vpop.permute.xlu0 %1319
        %v1322 = vsel %vm1100, %v1320, 0
        %v1325 = vsel %vm1104, %v1318, 0
        %1327 = vmatpush.bf16.msra.mxu0 0
        %1328 = vmatpush.bf16.msra.mxu0 0
        %1329 = vmatpush.bf16.msra.mxu0 0
        %1330 = vmatpush.bf16.msra.mxu0 0
        %1331 = vmatpush.bf16.msra.mxu0 0
        %1332 = vmatpush.bf16.msra.mxu0 0
        %1333 = vmatpush.bf16.msra.mxu0 0
        %1334 = vmatpush.bf16.msra.mxu0 %v1325
        %1335 = vmatmul.bf16.gmra.mxu0 %v1322
        %v1336 = vpop.f32.mrf.mxu0
        %v1337 = vadd.f32 0.0, %v1336
        %v1338 = vpop.f32.mrf.mxu0
        %v1339 = vadd.f32 0.0, %v1338
        %1340 = vdwg.mxu0
        %v1341 = vmul.f32 %v1337, 0.35355338
        %v1342 = vmul.f32 %v1339, 0.35355338
        %v1343 = vadd.f32 %v1341, %v867
        %v1344 = vadd.f32 %v1342, %v868
        %v1345 = vsel %vm1126, %v1343, -inf
        %1346 = vmax.xlane.f32.xlu0 %v1345
        %v1347 = vpop.xlane.xlu0 %1346
        %v1348 = vsel %vm1126, %v1344, -inf
        %1349 = vmax.xlane.f32.xlu0 %v1348
        %v1350 = vpop.xlane.xlu0 %1349
        %v1351 = vsub.f32 %v1343, %v1347
        %v1352 = vsub.f32 %v1344, %v1350
        %v1353 = vmul.f32 %v1351, 1.442695
        %v1354 = vpow.pop %v1353
        %v1355 = vmul.f32 %v1352, 1.442695
        %v1356 = vpow.pop %v1355
        %v1357 = vsel %vm1126, %v1354, 0.0
        %1358 = vadd.xlane.f32.xlu0 %v1357
        %v1359 = vpop.xlane.xlu0 %1358
        %v1360 = vsel %vm1126, %v1356, 0.0
        %1361 = vadd.xlane.f32.xlu0 %v1360
        %v1362 = vpop.xlane.xlu0 %1361
        %v1363 = vrcp.pop %v1359
        %v1364 = vrcp.pop %v1362
        %v1365 = vmul.f32 %v1354, %v1363
        %v1366 = vmul.f32 %v1356, %v1364
        %v1367 = vpack.c.bf16 %v1366, %v1365
        %1368 = vrot.lane.b32.xlu0 %v1150, 112
        %v1369 = vpop.permute.xlu0 %1368
        %v1372 = vsel %vm1126, %v1367, 0
        %1374 = vmatpush.bf16.msra.mxu0 0
        %1375 = vmatpush.bf16.msra.mxu0 0
        %1376 = vmatpush.bf16.msra.mxu0 0
        %1377 = vmatpush.bf16.msra.mxu0 0
        %1378 = vmatpush.bf16.msra.mxu0 0
        %1379 = vmatpush.bf16.msra.mxu0 0
        %1380 = vmatpush.bf16.msra.mxu0 0
        %1381 = vmatpush.bf16.msra.mxu0 %v1369
        %1382 = vmatmul.bf16.gmra.mxu0 %v1372
        %v1383 = vpop.f32.mrf.mxu0
        %v1384 = vadd.f32 0.0, %v1383
        %v1385 = vpop.f32.mrf.mxu0
        %v1386 = vadd.f32 0.0, %v1385
        %1387 = vdwg.mxu0
        %1388 = vrot.lane.b32.xlu0 %v1032, 104
        %v1389 = vpop.permute.xlu0 %1388
        %1390 = vrot.lane.b32.xlu0 %v1034, 104
        %v1391 = vpop.permute.xlu0 %1390
        %1394 = vxpose.xlu0.b32.start [1/16] %v1389, 128
        %1395 = vxpose.xlu0.b32.cont [2/16] %v1391, 128
        %1396 = vxpose.xlu0.b32.cont [3/16] 0.0, 128
        %1397 = vxpose.xlu0.b32.cont [4/16] 0.0, 128
        %1398 = vxpose.xlu0.b32.cont [5/16] 0.0, 128
        %1399 = vxpose.xlu0.b32.cont [6/16] 0.0, 128
        %1400 = vxpose.xlu0.b32.cont [7/16] 0.0, 128
        %1401 = vxpose.xlu0.b32.cont [8/16] 0.0, 128
        %1402 = vxpose.xlu0.b32.cont [9/16] 0.0, 128
        %1403 = vxpose.xlu0.b32.cont [10/16] 0.0, 128
        %1404 = vxpose.xlu0.b32.cont [11/16] 0.0, 128
        %1405 = vxpose.xlu0.b32.cont [12/16] 0.0, 128
        %1406 = vxpose.xlu0.b32.cont [13/16] 0.0, 128
        %1407 = vxpose.xlu0.b32.cont [14/16] 0.0, 128
        %1408 = vxpose.xlu0.b32.cont [15/16] 0.0, 128
        %1409 = vxpose.xlu0.b32.end [16/16] 0.0, 128
        %v1410 = vpop.trf.xlu0
        %v1411 = vpop.trf.xlu0
        %v1412 = vpop.trf.xlu0
        %v1413 = vpop.trf.xlu0
        %v1414 = vpop.trf.xlu0
        %v1415 = vpop.trf.xlu0
        %v1416 = vpop.trf.xlu0
        %v1417 = vpop.trf.xlu0
        %v1418 = vpop.trf.xlu0
        %v1419 = vpop.trf.xlu0
        %v1420 = vpop.trf.xlu0
        %v1421 = vpop.trf.xlu0
        %v1422 = vpop.trf.xlu0
        %v1423 = vpop.trf.xlu0
        %v1424 = vpop.trf.xlu0
        %v1425 = vpop.trf.xlu0
        %v1426 = vpack.c.bf16 %v1410, %v1410
        %1427 = vrot.lane.b32.xlu0 %v1066, 104
        %v1428 = vpop.permute.xlu0 %1427
        %v1430 = vsel %vm1100, %v1428, 0
        %v1433 = vsel %vm1104, %v1426, 0
        %1435 = vmatpush.bf16.msra.mxu0 0
        %1436 = vmatpush.bf16.msra.mxu0 0
        %1437 = vmatpush.bf16.msra.mxu0 0
        %1438 = vmatpush.bf16.msra.mxu0 0
        %1439 = vmatpush.bf16.msra.mxu0 0
        %1440 = vmatpush.bf16.msra.mxu0 0
        %1441 = vmatpush.bf16.msra.mxu0 0
        %1442 = vmatpush.bf16.msra.mxu0 %v1433
        %1443 = vmatmul.bf16.gmra.mxu0 %v1430
        %v1444 = vpop.f32.mrf.mxu0
        %v1445 = vadd.f32 0.0, %v1444
        %v1446 = vpop.f32.mrf.mxu0
        %v1447 = vadd.f32 0.0, %v1446
        %1448 = vdwg.mxu0
        %v1449 = vmul.f32 %v1445, 0.35355338
        %v1450 = vmul.f32 %v1447, 0.35355338
        %v1451 = vadd.f32 %v1449, %v867
        %v1452 = vadd.f32 %v1450, %v868
        %v1453 = vsel %vm1126, %v1451, -inf
        %1454 = vmax.xlane.f32.xlu0 %v1453
        %v1455 = vpop.xlane.xlu0 %1454
        %v1456 = vsel %vm1126, %v1452, -inf
        %1457 = vmax.xlane.f32.xlu0 %v1456
        %v1458 = vpop.xlane.xlu0 %1457
        %v1459 = vsub.f32 %v1451, %v1455
        %v1460 = vsub.f32 %v1452, %v1458
        %v1461 = vmul.f32 %v1459, 1.442695
        %v1462 = vpow.pop %v1461
        %v1463 = vmul.f32 %v1460, 1.442695
        %v1464 = vpow.pop %v1463
        %v1465 = vsel %vm1126, %v1462, 0.0
        %1466 = vadd.xlane.f32.xlu0 %v1465
        %v1467 = vpop.xlane.xlu0 %1466
        %v1468 = vsel %vm1126, %v1464, 0.0
        %1469 = vadd.xlane.f32.xlu0 %v1468
        %v1470 = vpop.xlane.xlu0 %1469
        %v1471 = vrcp.pop %v1467
        %v1472 = vrcp.pop %v1470
        %v1473 = vmul.f32 %v1462, %v1471
        %v1474 = vmul.f32 %v1464, %v1472
        %v1475 = vpack.c.bf16 %v1474, %v1473
        %1476 = vrot.lane.b32.xlu0 %v1150, 104
        %v1477 = vpop.permute.xlu0 %1476
        %v1480 = vsel %vm1126, %v1475, 0
        %1482 = vmatpush.bf16.msra.mxu0 0
        %1483 = vmatpush.bf16.msra.mxu0 0
        %1484 = vmatpush.bf16.msra.mxu0 0
        %1485 = vmatpush.bf16.msra.mxu0 0
        %1486 = vmatpush.bf16.msra.mxu0 0
        %1487 = vmatpush.bf16.msra.mxu0 0
        %1488 = vmatpush.bf16.msra.mxu0 0
        %1489 = vmatpush.bf16.msra.mxu0 %v1477
        %1490 = vmatmul.bf16.gmra.mxu0 %v1480
        %v1491 = vpop.f32.mrf.mxu0
        %v1492 = vadd.f32 0.0, %v1491
        %v1493 = vpop.f32.mrf.mxu0
        %v1494 = vadd.f32 0.0, %v1493
        %1495 = vdwg.mxu0
        %1498 = vrot.lane.b32.xlu0 %v1276, 8
        %v1499 = vpop.permute.xlu0 %1498
        %1500 = vrot.lane.b32.xlu0 %v1278, 8
        %v1501 = vpop.permute.xlu0 %1500
        %1506 = vrot.lane.b32.xlu0 %v1384, 16
        %v1507 = vpop.permute.xlu0 %1506
        %1508 = vrot.lane.b32.xlu0 %v1386, 16
        %v1509 = vpop.permute.xlu0 %1508
        %1514 = vrot.lane.b32.xlu0 %v1492, 24
        %v1515 = vpop.permute.xlu0 %1514
        %1516 = vrot.lane.b32.xlu0 %v1494, 24
        %v1517 = vpop.permute.xlu0 %1516
        %v1520 = vsel %vm1100, %v1164, %v1499
        %v1521 = vsel %vm1100, %v1166, %v1501
        %v1522 = vsel %vm1126, %v1520, %v1507
        %v1523 = vsel %vm1126, %v1521, %v1509
        %vm1524 = vcmask 195584
        %v1525 = vsel %vm1524, %v1522, %v1515
        %v1526 = vsel %vm1524, %v1523, %v1517
        %v1527 = vpack.c.bf16 %v1526, %v1525
        %v1528 = vld [vmem:[%s826] sm:$0xf]
        %v1529 = vld [vmem:[%s826 + $0x4] sm:$0xf]
        %v1530 = vld [vmem:[%s826 + $0x8] sm:$0xf]
        %v1531 = vld [vmem:[%s826 + $0xc] sm:$0xf]
        %v1532 = vld [vmem:[%s829] sm:$0x1]
        %v1534 = vperm.slane %v1532, 0
        %v1540 = vunpack.c.l.b16 %v1528
        %v1541 = vunpack.c.l.b16 %v1529
        %v1542 = vunpack.c.l.b16 %v1530
        %v1543 = vunpack.c.l.b16 %v1531
        %v1544 = vpack.c.b16 %v1541, %v1540
        %v1545 = vpack.c.b16 %v1543, %v1542
        %v1549 = vsel %vm871, %v1527, 0
        %1551 = vmatpush.bf16.msra.mxu0 0
        %1552 = vmatpush.bf16.msra.mxu0 0
        %1553 = vmatpush.bf16.msra.mxu0 0
        %1554 = vmatpush.bf16.msra.mxu0 0
        %1555 = vmatpush.bf16.msra.mxu0 0
        %1556 = vmatpush.bf16.msra.mxu0 0
        %1557 = vmatpush.bf16.msra.mxu0 %v1545
        %1558 = vmatpush.bf16.msra.mxu0 %v1544
        %1559 = vmatmul.bf16.gmra.mxu0 %v1549
        %v1560 = vpop.f32.mrf.mxu0
        %v1561 = vadd.f32 %v1534, %v1560
        %v1562 = vpop.f32.mrf.mxu0
        %v1563 = vadd.f32 %v1534, %v1562
        %1564 = vdwg.mxu0
        %v1565 = vadd.f32 %v1561, %v970
        %v1566 = vadd.f32 %v1563, %v971
        %v1567 = vld [vmem:[%s704] sm:$0x1]
        %v1568 = vld [vmem:[%s838] sm:$0x1]
        %v1569 = vsel %vm871, %v1565, 0.0
        %1570 = vadd.xlane.f32.xlu0 %v1569
        %v1571 = vpop.xlane.xlu0 %1570
        %v1572 = vsel %vm871, %v1566, 0.0
        %1573 = vadd.xlane.f32.xlu0 %v1572
        %v1574 = vpop.xlane.xlu0 %1573
        %v1575 = vmul.f32 %v1571, %v884
        %v1576 = vmul.f32 %v1574, %v884
        %v1577 = vsub.f32 %v1565, %v1575
        %v1578 = vsub.f32 %v1566, %v1576
        %v1579 = vmul.f32 %v1577, %v1577
        %v1580 = vmul.f32 %v1578, %v1578
        %v1581 = vsel %vm871, %v1579, 0.0
        %1582 = vadd.xlane.f32.xlu0 %v1581
        %v1583 = vpop.xlane.xlu0 %1582
        %v1584 = vsel %vm871, %v1580, 0.0
        %1585 = vadd.xlane.f32.xlu0 %v1584
        %v1586 = vpop.xlane.xlu0 %1585
        %v1587 = vmul.f32 %v1583, %v903
        %v1588 = vmul.f32 %v1586, %v903
        %v1589 = vrsqrt.pop %v1587
        %v1590 = vmul.f32 %v1589, %v1587
        %v1591 = vmul.f32 %v1590, %v1589
        %v1592 = vmul.f32 0.5, %v1591
        %v1593 = vsub.f32 1.5, %v1592
        %v1594 = vmul.f32 %v1589, %v1593
        %v1595 = vmul.f32 %v1587, %v1594
        %vm1596 = vcmp.eq.f32.partialorder %v1587, inf
        %v1597 = vsel %vm1596, %v1587, %v1595
        %vm1598 = vcmp.eq.f32.partialorder %v1587, 0.0
        %v1599 = vand.u32 %v1587, 2147483648
        %v1600 = vsel %vm1598, %v1599, %v1597
        %v1601 = vrsqrt.pop %v1588
        %v1602 = vmul.f32 %v1601, %v1588
        %v1603 = vmul.f32 %v1602, %v1601
        %v1604 = vmul.f32 0.5, %v1603
        %v1605 = vsub.f32 1.5, %v1604
        %v1606 = vmul.f32 %v1601, %v1605
        %v1607 = vmul.f32 %v1588, %v1606
        %vm1608 = vcmp.eq.f32.partialorder %v1588, inf
        %v1609 = vsel %vm1608, %v1588, %v1607
        %vm1610 = vcmp.eq.f32.partialorder %v1588, 0.0
        %v1611 = vand.u32 %v1588, 2147483648
        %v1612 = vsel %vm1610, %v1611, %v1609
        %v1613 = vadd.f32 %v1600, 1e-06
        %v1614 = vadd.f32 %v1612, 1e-06
        %v1615 = vrcp.pop %v1613
        %v1616 = vmul.f32 %v1613, %v1615
        %v1617 = vsub.f32 1.0, %v1616
        %v1618 = vmul.f32 %v1615, %v1617
        %v1619 = vadd.f32 %v1615, %v1618
        %vm1620 = vweird.f32 %v1613
        %vm1621 = vweird.f32 %v1615
        %vm1622 = vmor %vm1620, %vm1621
        %v1623 = vsel %vm1622, %v1615, %v1619
        %v1624 = vand.u32 2147483647, %v1613
        %vm1625 = vcmp.eq.f32.partialorder %v1624, 8.507059e+37
        %v1626 = vand.u32 %v1613, 2147483648
        %v1627 = vor.u32 1.1754944e-38, %v1626
        %v1628 = vsel %vm1625, %v1627, %v1623
        %v1629 = vmul.f32 %v1577, %v1628
        %v1630 = vrcp.pop %v1614
        %v1631 = vmul.f32 %v1614, %v1630
        %v1632 = vsub.f32 1.0, %v1631
        %v1633 = vmul.f32 %v1630, %v1632
        %v1634 = vadd.f32 %v1630, %v1633
        %vm1635 = vweird.f32 %v1614
        %vm1636 = vweird.f32 %v1630
        %vm1637 = vmor %vm1635, %vm1636
        %v1638 = vsel %vm1637, %v1630, %v1634
        %v1639 = vand.u32 2147483647, %v1614
        %vm1640 = vcmp.eq.f32.partialorder %v1639, 8.507059e+37
        %v1641 = vand.u32 %v1614, 2147483648
        %v1642 = vor.u32 1.1754944e-38, %v1641
        %v1643 = vsel %vm1640, %v1642, %v1638
        %v1644 = vmul.f32 %v1578, %v1643
        %v1646 = vperm.slane %v1567, 0
        %v1648 = vmul.f32 %v1646, %v1629
        %v1649 = vmul.f32 %v1646, %v1644
        %v1651 = vperm.slane %v1568, 0
        %v1653 = vadd.f32 %v1648, %v1651
        %v1654 = vadd.f32 %v1649, %v1651
        %v1655 = vpack.c.bf16 %v1654, %v1653
        %v1656 = vld [vmem:[%s843] sm:$0xf]
        %v1657 = vld [vmem:[%s843 + $0x4] sm:$0xf]
        %v1658 = vld [vmem:[%s843 + $0x8] sm:$0xf]
        %v1659 = vld [vmem:[%s843 + $0xc] sm:$0xf]
        %v1660 = vld [vmem:[%s846] sm:$0x1]
        %v1662 = vperm.slane %v1660, 0
        %v1668 = vunpack.c.l.b16 %v1656
        %v1669 = vunpack.c.l.b16 %v1657
        %v1670 = vunpack.c.l.b16 %v1658
        %v1671 = vunpack.c.l.b16 %v1659
        %v1672 = vpack.c.b16 %v1669, %v1668
        %v1673 = vpack.c.b16 %v1671, %v1670
        %v1677 = vsel %vm871, %v1655, 0
        %1679 = vmatpush.bf16.msra.mxu0 0
        %1680 = vmatpush.bf16.msra.mxu0 0
        %1681 = vmatpush.bf16.msra.mxu0 0
        %1682 = vmatpush.bf16.msra.mxu0 0
        %1683 = vmatpush.bf16.msra.mxu0 0
        %1684 = vmatpush.bf16.msra.mxu0 0
        %1685 = vmatpush.bf16.msra.mxu0 %v1673
        %1686 = vmatpush.bf16.msra.mxu0 %v1672
        %1687 = vmatmul.bf16.gmra.mxu0 %v1677
        %v1688 = vpop.f32.mrf.mxu0
        %v1689 = vadd.f32 %v1662, %v1688
        %v1690 = vpop.f32.mrf.mxu0
        %v1691 = vadd.f32 %v1662, %v1690
        %1692 = vdwg.mxu0
        %v1693 = vmax.f32 %v1689, 0.0
        %v1694 = vmax.f32 %v1691, 0.0
        %v1695 = vpack.c.bf16 %v1694, %v1693
        %v1696 = vld [vmem:[%s851] sm:$0xf]
        %v1697 = vld [vmem:[%s851 + $0x4] sm:$0xf]
        %v1698 = vld [vmem:[%s851 + $0x8] sm:$0xf]
        %v1699 = vld [vmem:[%s851 + $0xc] sm:$0xf]
        %v1700 = vld [vmem:[%s851 + $0x10] sm:$0xf]
        %v1701 = vld [vmem:[%s851 + $0x14] sm:$0xf]
        %v1702 = vld [vmem:[%s851 + $0x18] sm:$0xf]
        %v1703 = vld [vmem:[%s851 + $0x1c] sm:$0xf]
        %v1704 = vld [vmem:[%s851 + $0x20] sm:$0xf]
        %v1705 = vld [vmem:[%s851 + $0x24] sm:$0xf]
        %v1706 = vld [vmem:[%s851 + $0x28] sm:$0xf]
        %v1707 = vld [vmem:[%s851 + $0x2c] sm:$0xf]
        %v1708 = vld [vmem:[%s851 + $0x30] sm:$0xf]
        %v1709 = vld [vmem:[%s851 + $0x34] sm:$0xf]
        %v1710 = vld [vmem:[%s851 + $0x38] sm:$0xf]
        %v1711 = vld [vmem:[%s851 + $0x3c] sm:$0xf]
        %v1712 = vld [vmem:[%s854] sm:$0x1]
        %v1714 = vperm.slane %v1712, 0
        %v1732 = vunpack.c.l.b16 %v1696
        %v1733 = vunpack.c.l.b16 %v1697
        %v1734 = vunpack.c.l.b16 %v1698
        %v1735 = vunpack.c.l.b16 %v1699
        %v1736 = vunpack.c.l.b16 %v1700
        %v1737 = vunpack.c.l.b16 %v1701
        %v1738 = vunpack.c.l.b16 %v1702
        %v1739 = vunpack.c.l.b16 %v1703
        %v1740 = vunpack.c.l.b16 %v1704
        %v1741 = vunpack.c.l.b16 %v1705
        %v1742 = vunpack.c.l.b16 %v1706
        %v1743 = vunpack.c.l.b16 %v1707
        %v1744 = vunpack.c.l.b16 %v1708
        %v1745 = vunpack.c.l.b16 %v1709
        %v1746 = vunpack.c.l.b16 %v1710
        %v1747 = vunpack.c.l.b16 %v1711
        %v1748 = vpack.c.b16 %v1733, %v1732
        %v1749 = vpack.c.b16 %v1735, %v1734
        %v1750 = vpack.c.b16 %v1737, %v1736
        %v1751 = vpack.c.b16 %v1739, %v1738
        %v1752 = vpack.c.b16 %v1741, %v1740
        %v1753 = vpack.c.b16 %v1743, %v1742
        %v1754 = vpack.c.b16 %v1745, %v1744
        %v1755 = vpack.c.b16 %v1747, %v1746
        %1764 = vmatpush.bf16.msra.mxu0 %v1755
        %1765 = vmatpush.bf16.msra.mxu0 %v1754
        %1766 = vmatpush.bf16.msra.mxu0 %v1753
        %1767 = vmatpush.bf16.msra.mxu0 %v1752
        %1768 = vmatpush.bf16.msra.mxu0 %v1751
        %1769 = vmatpush.bf16.msra.mxu0 %v1750
        %1770 = vmatpush.bf16.msra.mxu0 %v1749
        %1771 = vmatpush.bf16.msra.mxu0 %v1748
        %1772 = vmatmul.bf16.gmra.mxu0 %v1695
        %v1773 = vpop.f32.mrf.mxu0
        %v1774 = vadd.f32 %v1714, %v1773
        %v1775 = vpop.f32.mrf.mxu0
        %v1776 = vadd.f32 %v1714, %v1775
        %1777 = vdwg.mxu0
        %v1778 = vadd.f32 %v1774, %v1653
        %v1779 = vadd.f32 %v1776, %v1654
        %1780 = vst.msk [vmem:[#allocation2] sm:$0xff] %vm871, %v1778
        %1781 = vst.msk [vmem:[#allocation2 + $0x8] sm:$0xff] %vm871, %v1779
        %p1782 = scmp.eq.s32.totalorder %s33, 1
        // Predicated region
        $region117: #{tpu_custom_call.1} parent=95 // pred_check
          %p1783 = pneg %p1782
        $region118: #{tpu_custom_call.1} parent=95 // pred_check_branch
          %1785 = sbr.rel (%p1783) target = $region120
        $region119: #{tpu_custom_call.1} parent=95 // pred_region
          %v1786 = vld [vmem:[%s15] sm:$0x1]
          %v1787 = vld [vmem:[%s16] sm:$0x1]
          %v1788 = vsel %vm871, %v1778, 0.0
          %1789 = vadd.xlane.f32.xlu0 %v1788
          %v1790 = vpop.xlane.xlu0 %1789
          %v1791 = vsel %vm871, %v1779, 0.0
          %1792 = vadd.xlane.f32.xlu0 %v1791
          %v1793 = vpop.xlane.xlu0 %1792
          %v1794 = vmul.f32 %v1790, %v884
          %v1795 = vmul.f32 %v1793, %v884
          %v1796 = vsub.f32 %v1778, %v1794
          %v1797 = vsub.f32 %v1779, %v1795
          %v1798 = vmul.f32 %v1796, %v1796
          %v1799 = vmul.f32 %v1797, %v1797
          %v1800 = vsel %vm871, %v1798, 0.0
          %1801 = vadd.xlane.f32.xlu0 %v1800
          %v1802 = vpop.xlane.xlu0 %1801
          %v1803 = vsel %vm871, %v1799, 0.0
          %1804 = vadd.xlane.f32.xlu0 %v1803
          %v1805 = vpop.xlane.xlu0 %1804
          %v1806 = vmul.f32 %v1802, %v903
          %v1807 = vmul.f32 %v1805, %v903
          %v1808 = vrsqrt.pop %v1806
          %v1809 = vmul.f32 %v1808, %v1806
          %v1810 = vmul.f32 %v1809, %v1808
          %v1811 = vmul.f32 0.5, %v1810
          %v1812 = vsub.f32 1.5, %v1811
          %v1813 = vmul.f32 %v1808, %v1812
          %v1814 = vmul.f32 %v1806, %v1813
          %vm1815 = vcmp.eq.f32.partialorder %v1806, inf
          %v1816 = vsel %vm1815, %v1806, %v1814
          %vm1817 = vcmp.eq.f32.partialorder %v1806, 0.0
          %v1818 = vand.u32 %v1806, 2147483648
          %v1819 = vsel %vm1817, %v1818, %v1816
          %v1820 = vrsqrt.pop %v1807
          %v1821 = vmul.f32 %v1820, %v1807
          %v1822 = vmul.f32 %v1821, %v1820
          %v1823 = vmul.f32 0.5, %v1822
          %v1824 = vsub.f32 1.5, %v1823
          %v1825 = vmul.f32 %v1820, %v1824
          %v1826 = vmul.f32 %v1807, %v1825
          %vm1827 = vcmp.eq.f32.partialorder %v1807, inf
          %v1828 = vsel %vm1827, %v1807, %v1826
          %vm1829 = vcmp.eq.f32.partialorder %v1807, 0.0
          %v1830 = vand.u32 %v1807, 2147483648
          %v1831 = vsel %vm1829, %v1830, %v1828
          %v1832 = vadd.f32 %v1819, 1e-06
          %v1833 = vadd.f32 %v1831, 1e-06
          %v1834 = vrcp.pop %v1832
          %v1835 = vmul.f32 %v1832, %v1834
          %v1836 = vsub.f32 1.0, %v1835
          %v1837 = vmul.f32 %v1834, %v1836
          %v1838 = vadd.f32 %v1834, %v1837
          %vm1839 = vweird.f32 %v1832
          %vm1840 = vweird.f32 %v1834
          %vm1841 = vmor %vm1839, %vm1840
          %v1842 = vsel %vm1841, %v1834, %v1838
          %v1843 = vand.u32 2147483647, %v1832
          %vm1844 = vcmp.eq.f32.partialorder %v1843, 8.507059e+37
          %v1845 = vand.u32 %v1832, 2147483648
          %v1846 = vor.u32 1.1754944e-38, %v1845
          %v1847 = vsel %vm1844, %v1846, %v1842
          %v1848 = vmul.f32 %v1796, %v1847
          %v1849 = vrcp.pop %v1833
          %v1850 = vmul.f32 %v1833, %v1849
          %v1851 = vsub.f32 1.0, %v1850
          %v1852 = vmul.f32 %v1849, %v1851
          %v1853 = vadd.f32 %v1849, %v1852
          %vm1854 = vweird.f32 %v1833
          %vm1855 = vweird.f32 %v1849
          %vm1856 = vmor %vm1854, %vm1855
          %v1857 = vsel %vm1856, %v1849, %v1853
          %v1858 = vand.u32 2147483647, %v1833
          %vm1859 = vcmp.eq.f32.partialorder %v1858, 8.507059e+37
          %v1860 = vand.u32 %v1833, 2147483648
          %v1861 = vor.u32 1.1754944e-38, %v1860
          %v1862 = vsel %vm1859, %v1861, %v1857
          %v1863 = vmul.f32 %v1797, %v1862
          %v1865 = vperm.slane %v1786, 0
          %v1867 = vmul.f32 %v1865, %v1848
          %v1868 = vmul.f32 %v1865, %v1863
          %v1870 = vperm.slane %v1787, 0
          %v1872 = vadd.f32 %v1867, %v1870
          %v1873 = vadd.f32 %v1868, %v1870
          %v1874 = vpack.c.bf16 %v1873, %v1872
          %v1875 = vld [vmem:[#allocation9] sm:$0xf]
          %v1876 = vld [vmem:[#allocation9 + $0x4] sm:$0xf]
          %v1877 = vld [vmem:[#allocation9 + $0x8] sm:$0xf]
          %v1878 = vld [vmem:[#allocation9 + $0xc] sm:$0xf]
          %v1879 = vld [vmem:[%s18] sm:$0x1]
          %v1881 = vperm.slane %v1879, 0
          %v1887 = vunpack.c.l.b16 %v1875
          %v1888 = vunpack.c.l.b16 %v1876
          %v1889 = vunpack.c.l.b16 %v1877
          %v1890 = vunpack.c.l.b16 %v1878
          %v1891 = vpack.c.b16 %v1888, %v1887
          %v1892 = vpack.c.b16 %v1890, %v1889
          %v1896 = vsel %vm871, %v1874, 0
          %1898 = vmatpush.bf16.msra.mxu0 0
          %1899 = vmatpush.bf16.msra.mxu0 0
          %1900 = vmatpush.bf16.msra.mxu0 0
          %1901 = vmatpush.bf16.msra.mxu0 0
          %1902 = vmatpush.bf16.msra.mxu0 0
          %1903 = vmatpush.bf16.msra.mxu0 0
          %1904 = vmatpush.bf16.msra.mxu0 %v1892
          %1905 = vmatpush.bf16.msra.mxu0 %v1891
          %1906 = vmatmul.bf16.gmra.mxu0 %v1896
          %v1907 = vpop.f32.mrf.mxu0
          %v1908 = vadd.f32 %v1881, %v1907
          %v1909 = vpop.f32.mrf.mxu0
          %v1910 = vadd.f32 %v1881, %v1909
          %1911 = vdwg.mxu0
          %1912 = vst [vmem:[#allocation10] sm:$0xff] %v1908
          %1913 = vst [vmem:[#allocation10 + $0x8] sm:$0xff] %v1910
        $region120: #{tpu_custom_call.1} parent=95 // pred_fallthru
          _
        // Predicated region
        $region121: #{tpu_custom_call.1} parent=95 // pred_check
          %p1914 = pneg %p510
        $region122: #{tpu_custom_call.1} parent=95 // pred_check_branch
          %1916 = sbr.rel (%p1914) target = $region124
        $region123: #{tpu_custom_call.1} parent=95 // pred_region
          %1918 = vsyncadd [#allocation5], 0
          %s1919 = sshll.u32 [#allocation10], 4
          %s1920 = int_to_ptr.vmem [resolvable:$true] %s1919
          %s1921 = sshll.u32 %s19, 4
          %s1922 = int_to_ptr.hbm [resolvable:$true] %s1921
          %1927 = dma.vmem_to_hbm [thread:$0]  %s1920, 256, %s1922, [#allocation5], 128, 128, 8
        $region124: #{tpu_custom_call.1} parent=95 // pred_fallthru
          _
        // Predicated region
        $region125: #{tpu_custom_call.1} parent=95 // pred_check
          %p1928 = pneg %p510
        $region126: #{tpu_custom_call.1} parent=95 // pred_check_branch
          %1930 = sbr.rel (%p1928) target = $region128
        $region127: #{tpu_custom_call.1} parent=95 // pred_region
          %1932 = dma.done [#allocation5], 256
        $region128: #{tpu_custom_call.1} parent=95 // pred_fallthru
          _
      $region96: #{tpu_custom_call.1} parent=5 // pred_fallthru
        _
      %p1933 = scmp.le.s32.totalorder 2, %s28
      // Predicated region
      $region129: #{tpu_custom_call.1} parent=5 // pred_check
        %p1934 = pneg %p1933
      $region130: #{tpu_custom_call.1} parent=5 // pred_check_branch
        %1936 = sbr.rel (%p1934) target = $region132
      $region131: #{tpu_custom_call.1} parent=5 // pred_region
        %s1937 = ssub.s32 %s28, 2
      $region132: #{tpu_custom_call.1} parent=5 // pred_fallthru
        _
    $region6: #{tpu_custom_call.1} parent=1 // loop_footer
      %s32 = sadd.s32 1, %s28
    $region7: #{tpu_custom_call.1} parent=1 // loop_footer_branch
      %27 = sbr.rel target = $region3
    $region8: #{tpu_custom_call.1} parent=1 // loop_exit
      _
    %1938 = vsyncpa [#allocation4], 1
    %s1939 = scalar_lea.sflag [#allocation4], 1
    %1940 = vsyncpa %s1939, 1
    %1941 = vsyncpa [#allocation7], 1
    %1942 = vsyncpa [#allocation5], 1
    %s1943 = scalar_lea.sflag [#allocation5], 1
    %1944 = vsyncpa %s1943, 1

</llo_original>
